<compile_context>
chip_gen: v7x
topology: tpu7x:2x2x1
jax: 0.10.0
libtpu: 0.0.40
codegen_flags: <defaults>
</compile_context>

<pallas_src>
import functools

import jax
import jax.numpy as jnp
import numpy as np
from jax.experimental import pallas as pl
from jax.experimental.pallas import tpu as pltpu

EPS_LN = 1e-5  # nn.LayerNorm default eps


def _round_up(x, m):
    return (x + m - 1) // m * m


def _cdiv(a, b):
    return -(-a // b)


def _regbn_kernel(f_ref, g_ref, w_ref, out_ref, flag_ref, *,
                  valid_rows, block_rows, mxu_precision):
    f = f_ref[...]                     # (bb, Df), native dtype
    g = g_ref[...]                     # (bb, Dg), native dtype
    w = w_ref[...]                     # (Dg, Df), native dtype

    # f_mapped2g = g @ W on the MXU, f32 accumulate. For f32 operands we use
    # Precision.HIGHEST (multi-pass, matches torch.mm); the kernel is HBM-bound
    # so the extra MXU passes are free. bf16 operands stay MXU-native.
    f_mapped = jnp.dot(g, w, preferred_element_type=jnp.float32,
                       precision=mxu_precision)
    f_r = f.astype(jnp.float32) - f_mapped

    # Two-pass LayerNorm over the channel dim (no affine), f32 stats. Two-pass
    # avoids the E[x^2]-mean^2 cancellation problem and is free under the HBM
    # roofline (XLU lane reduces + VPU elementwise).
    inv_n = jnp.float32(1.0 / f_r.shape[-1])
    s1 = jnp.sum(f_r, axis=-1, keepdims=True)                     # (bb, 1)
    mean = s1 * inv_n
    centered = f_r - mean
    var = jnp.sum(centered * centered, axis=-1, keepdims=True) * inv_n
    out_ref[...] = (centered * jax.lax.rsqrt(var + EPS_LN)).astype(out_ref.dtype)

    # NaN guard, reusing the row sums already computed for LayerNorm: a NaN
    # anywhere in a row of f, or anywhere in the matching row of g (NaN
    # propagates through g @ W since NaN*anything = NaN), makes that row of
    # f_r — and hence s1 — NaN. This replaces full-tile isnan passes over f/g.
    # (Only semantic delta vs. torch: inf-only inputs whose projection turns
    # the inf into NaN will also trip the guard; those inputs produce NaN
    # outputs in the reference anyway.)
    # The grid is ceil(B / block_rows); the tail block's rows >= B hold
    # whatever was in VMEM and MUST be masked out of the count.
    row = jax.lax.broadcasted_iota(jnp.int32, (f.shape[0], 128), 0)  # (bb,128)
    valid = (pl.program_id(0) * block_rows + row) < valid_rows
    nan_rows = (valid & jnp.isnan(s1)).astype(jnp.float32)           # (bb,128)
    # Tiny lane-dense (8,128) output tile per block: sublane reduce only, no
    # scalar extraction, no cross-grid accumulation; batch axis stays parallel.
    flag_ref[...] = jnp.broadcast_to(
        jnp.sum(nan_rows, axis=0, keepdims=True), flag_ref.shape)


def _layernorm_lastdim(x):
    x32 = x.astype(jnp.float32)
    m = jnp.mean(x32, axis=-1, keepdims=True)
    v = jnp.mean(jnp.square(x32 - m), axis=-1, keepdims=True)
    return ((x32 - m) * jax.lax.rsqrt(v + EPS_LN)).astype(x.dtype)


def _vmem_budget_bytes():
    # Real per-core VMEM with ~25% headroom; fall back to the smallest
    # current-generation value (v7x: 64 MiB per TensorCore).
    try:
        cap = int(pltpu.get_tpu_info().vmem_capacity_bytes)
    except Exception:
        cap = 64 * 1024 * 1024
    return cap * 3 // 4


def regbn_forward(f, g, W, *, batch_block=None):
    """RegBN forward, inference path. f:(B,Df), g:(B,Dg), W:(Dg,Df)."""
    B, Df = f.shape
    Bg, Dg = g.shape
    assert Bg == B and W.shape == (Dg, Df)

    f_isz = jnp.dtype(f.dtype).itemsize
    g_isz = jnp.dtype(g.dtype).itemsize
    w_bytes = Dg * Df * jnp.dtype(W.dtype).itemsize

    # Sublane packing for the batch dim: 8 rows for f32, 16 for bf16, 32 for i8/fp8.
    packing = max(8, 32 // f_isz)
    vmem_budget = _vmem_budget_bytes()

    if batch_block is None:
        # Per-grid-step VMEM per batch row: double-buffered f in + f out,
        # double-buffered g in, plus ~3 f32-wide live intermediates
        # (f_r, centered, f32 output before the cast).
        per_row = 4 * Df * f_isz + 2 * Dg * g_isz + 3 * Df * 4
        fixed = 2 * w_bytes + 2 * 8 * 128 * 4            # W buffers + flag tiles
        rows_vmem = max(packing, (vmem_budget - fixed) // max(per_row, 1))
        # Bandwidth target: ~2 MiB of f per grid step (and >=256 rows) so the
        # ~0.35 us per-grid-step overhead stays amortized.
        rows_target = max(256, (2 * 1024 * 1024) // max(Df * f_isz, 1))
        batch_block = min(rows_target, rows_vmem)
        # Keep at least two grid blocks for large batches so the "parallel"
        # axis shards across both v7x TensorCores (negligible cost on 1-TC chips).
        if B >= 512:
            batch_block = min(batch_block, _round_up(_cdiv(B, 2), packing))

    batch_block = min(batch_block, _round_up(B, packing))
    batch_block = max(packing, (batch_block // packing) * packing)
    num_blocks = _cdiv(B, batch_block)

    # Scoped-VMEM limit: actual footprint (incl. f32 intermediates) + headroom,
    # clamped to the per-core budget (64 MiB/TC on v7x, 128 MiB on v5e/v6e).
    vmem_est = (4 * batch_block * Df * f_isz
                + 2 * batch_block * Dg * g_isz
                + 3 * batch_block * Df * 4
                + 2 * w_bytes
                + 2 * 8 * 128 * 4)
    vmem_limit = int(min(max(vmem_est * 5 // 4, 32 * 1024 * 1024), vmem_budget))

    # W has a constant index_map, so Pallas DMAs it only once. When W is big
    # enough to matter (large Dg*Df on v7x's 64 MiB VMEM), a single pipeline
    # buffer halves its footprint; tiny W keeps the default.
    if w_bytes > 4 * 1024 * 1024:
        w_spec = pl.BlockSpec((Dg, Df), lambda i: (0, 0),
                              pipeline_mode=pl.Buffered(1))
    else:
        w_spec = pl.BlockSpec((Dg, Df), lambda i: (0, 0))

    use_highest = (f.dtype == jnp.float32 and g.dtype == jnp.float32
                   and W.dtype == jnp.float32)
    kernel = functools.partial(
        _regbn_kernel,
        valid_rows=B,
        block_rows=batch_block,
        mxu_precision=jax.lax.Precision.HIGHEST if use_highest else None,
    )

    # No wrapper-side batch padding / output slicing: grid = ceil(B / bb),
    # Pallas clamps the tail block's output DMA to the array bounds and the
    # kernel masks tail rows out of the NaN count.
    f_ln, nan_counts = pl.pallas_call(
        kernel,
        out_shape=(
            jax.ShapeDtypeStruct((B, Df), f.dtype),
            jax.ShapeDtypeStruct((num_blocks * 8, 128), jnp.float32),
        ),
        grid_spec=pltpu.PrefetchScalarGridSpec(
            num_scalar_prefetch=0,
            grid=(num_blocks,),
            in_specs=[
                pl.BlockSpec((batch_block, Df), lambda i: (i, 0)),  # f tile
                pl.BlockSpec((batch_block, Dg), lambda i: (i, 0)),  # g tile
                w_spec,                                             # W (whole, constant)
            ],
            out_specs=[
                pl.BlockSpec((batch_block, Df), lambda i: (i, 0)),  # LN(f - gW)
                pl.BlockSpec((8, 128), lambda i: (i, 0)),           # per-block NaN count
            ],
        ),
        compiler_params=pltpu.CompilerParams(
            dimension_semantics=("parallel",),   # batch tiles are independent
            vmem_limit_bytes=vmem_limit,
        ),
    )(f, g, W)

    # LayerNorm of g in plain XLA: Dg is typically << 128 lanes, so an
    # in-kernel store would be a masked partial store; this path is tiny.
    g_ln = _layernorm_lastdim(g)

    # Module semantics: any NaN in f or g -> return inputs unchanged.
    has_nan = jnp.sum(nan_counts) > 0.0
    return jax.lax.cond(has_nan,
                        lambda: (f, g),
                        lambda: (f_ln, g_ln))


def _reference(f, g, W):
    f_r = f - jnp.dot(g, W, precision=jax.lax.Precision.HIGHEST)

    def ln(x):
        m = jnp.mean(x, axis=-1, keepdims=True)
        v = jnp.mean((x - m) ** 2, axis=-1, keepdims=True)
        return (x - m) * jax.lax.rsqrt(v + EPS_LN)

    return ln(f_r), ln(g)


if __name__ == "__main__":
    # Shapes from the module's docstring example: batch=100, f:128ch, g:16ch.
    B, f_num_channels, g_num_channels = 100, 128, 16

    key = jax.random.PRNGKey(0)
    kf, kg, kw = jax.random.split(key, 3)
    f = jax.random.normal(kf, (B, f_num_channels), dtype=jnp.float32)
    g = jax.random.normal(kg, (B, g_num_channels), dtype=jnp.float32)
    # W buffer is zeros at __init__; use a deterministic nonzero value so the
    # projection path is actually exercised.
    W = 0.05 * jax.random.normal(kw, (g_num_channels, f_num_channels),
                                 dtype=jnp.float32)

    fwd = jax.jit(regbn_forward)
    f_out, g_out = fwd(f, g, W)
    jax.block_until_ready((f_out, g_out))

    f_ref, g_ref = _reference(f, g, W)
    np.testing.assert_allclose(np.asarray(f_out), np.asarray(f_ref),
                               rtol=1e-4, atol=1e-4)
    np.testing.assert_allclose(np.asarray(g_out), np.asarray(g_ref),
                               rtol=1e-5, atol=1e-5)

    # Small tile forces a multi-block grid with a ragged tail (100 % 32 != 0):
    # exercises the clamped tail output store and the tail-row NaN masking
    # (garbage VMEM rows must not false-trigger the guard).
    fwd_multi = jax.jit(functools.partial(regbn_forward, batch_block=32))
    f_out_m, g_out_m = fwd_multi(f, g, W)
    jax.block_until_ready((f_out_m, g_out_m))
    np.testing.assert_allclose(np.asarray(f_out_m), np.asarray(f_ref),
                               rtol=1e-4, atol=1e-4)
    np.testing.assert_allclose(np.asarray(g_out_m), np.asarray(g_ref),
                               rtol=1e-5, atol=1e-5)

    # NaN guard: any NaN in f -> inputs returned unchanged.
    f_nan = f.at[3, 5].set(jnp.nan)
    f_out2, g_out2 = fwd_multi(f_nan, g, W)
    jax.block_until_ready((f_out2, g_out2))
    np.testing.assert_array_equal(np.asarray(f_out2), np.asarray(f_nan))
    np.testing.assert_array_equal(np.asarray(g_out2), np.asarray(g))

    # NaN in g must also trip the guard (detected through its propagation in g @ W).
    g_nan = g.at[7, 2].set(jnp.nan)
    f_out3, g_out3 = fwd(f, g_nan, W)
    jax.block_until_ready((f_out3, g_out3))
    np.testing.assert_array_equal(np.asarray(f_out3), np.asarray(f))
    np.testing.assert_array_equal(np.asarray(g_out3), np.asarray(g_nan))

    print("KERNEL_OK")
</pallas_src>

<mosaic_0001>
module attributes {stable_mosaic.version = 11 : i64} {
  func.func @_regbn_kernel(%arg0: i32, %arg1: memref<104x128xf32, #tpu.memory_space<vmem>>, %arg2: memref<104x16xf32, #tpu.memory_space<vmem>>, %arg3: memref<16x128xf32, #tpu.memory_space<vmem>>, %arg4: memref<104x128xf32, #tpu.memory_space<vmem>>, %arg5: memref<8x128xf32, #tpu.memory_space<vmem>>) attributes {dimension_semantics = [#tpu.dimension_semantics<parallel>], iteration_bounds = array<i64: 1>, scalar_prefetch = 0 : i64, scratch_operands = 0 : i64, tpu.core_type = #tpu.core_type<tc>, window_params = [{transform_indices = @transform_0, window_bounds = array<i64: 104, 128>}, {transform_indices = @transform_1, window_bounds = array<i64: 104, 16>}, {pipeline_mode = #tpu.pipeline_mode<synchronous>, transform_indices = @transform_2, window_bounds = array<i64: 16, 128>}, {transform_indices = @transform_3, window_bounds = array<i64: 104, 128>}, {transform_indices = @transform_4, window_bounds = array<i64: 8, 128>}]} {
    %c0 = arith.constant 0 : index
    %c0_0 = arith.constant 0 : index
    %0 = vector.load %arg1[%c0, %c0_0] : memref<104x128xf32, #tpu.memory_space<vmem>>, vector<104x128xf32>
    %c0_1 = arith.constant 0 : index
    %c0_2 = arith.constant 0 : index
    %1 = vector.load %arg2[%c0_1, %c0_2] : memref<104x16xf32, #tpu.memory_space<vmem>>, vector<104x16xf32>
    %c0_3 = arith.constant 0 : index
    %c0_4 = arith.constant 0 : index
    %2 = vector.load %arg3[%c0_3, %c0_4] : memref<16x128xf32, #tpu.memory_space<vmem>>, vector<16x128xf32>
    %cst = arith.constant dense<0.000000e+00> : vector<104x128xf32>
    %3 = tpu.matmul %1, %2, %cst {dimension_numbers = #tpu.dot_dimension_numbers<[1], [0], [0], [1], [0, 0, 1, 1], [], []>, precision = #tpu.contract_precision<fp32>} : vector<104x16xf32>, vector<16x128xf32>, vector<104x128xf32> -> vector<104x128xf32>
    %4 = arith.subf %0, %3 : vector<104x128xf32>
    %cst_5 = arith.constant dense<0.000000e+00> : vector<104xf32>
    %5 = vector.multi_reduction <add>, %4, %cst_5 [1] : vector<104x128xf32> to vector<104xf32>
    %6 = vector.shape_cast %5 : vector<104xf32> to vector<104x1xf32>
    %cst_6 = arith.constant 7.812500e-03 : f32
    %7 = vector.broadcast %cst_6 : f32 to vector<104x1xf32>
    %8 = arith.mulf %6, %7 : vector<104x1xf32>
    %9 = vector.broadcast %8 : vector<104x1xf32> to vector<104x128xf32>
    %10 = arith.subf %4, %9 : vector<104x128xf32>
    %11 = arith.mulf %10, %10 : vector<104x128xf32>
    %cst_7 = arith.constant dense<0.000000e+00> : vector<104xf32>
    %12 = vector.multi_reduction <add>, %11, %cst_7 [1] : vector<104x128xf32> to vector<104xf32>
    %13 = vector.shape_cast %12 : vector<104xf32> to vector<104x1xf32>
    %cst_8 = arith.constant 7.812500e-03 : f32
    %14 = vector.broadcast %cst_8 : f32 to vector<104x1xf32>
    %15 = arith.mulf %13, %14 : vector<104x1xf32>
    %cst_9 = arith.constant 9.99999974E-6 : f32
    %16 = vector.broadcast %cst_9 : f32 to vector<104x1xf32>
    %17 = arith.addf %15, %16 : vector<104x1xf32>
    %18 = math.rsqrt %17 : vector<104x1xf32>
    %19 = vector.broadcast %18 : vector<104x1xf32> to vector<104x128xf32>
    %20 = arith.mulf %10, %19 : vector<104x128xf32>
    %c0_10 = arith.constant 0 : index
    %c0_11 = arith.constant 0 : index
    %21 = vector.load %arg4[%c0_10, %c0_11] : memref<104x128xf32, #tpu.memory_space<vmem>>, vector<104x128xf32>
    tpu.vector_store %arg4[%c0_10, %c0_11], %20 {strides = array<i32>} : memref<104x128xf32, #tpu.memory_space<vmem>>, vector<104x128xf32>,
    %22 = tpu.iota {dimensions = array<i32: 0>} : vector<104x128xi32>
    %c104_i32 = arith.constant 104 : i32
    %23 = arith.muli %arg0, %c104_i32 : i32
    %24 = vector.broadcast %23 : i32 to vector<104x128xi32>
    %25 = arith.addi %24, %22 : vector<104x128xi32>
    %c100_i32 = arith.constant 100 : i32
    %26 = vector.broadcast %c100_i32 : i32 to vector<104x128xi32>
    %27 = arith.cmpi slt, %25, %26 : vector<104x128xi32>
    %28 = arith.cmpf one, %6, %6 : vector<104x1xf32>
    %29 = vector.broadcast %28 : vector<104x1xi1> to vector<104x128xi1>
    %30 = arith.andi %27, %29 : vector<104x128xi1>
    %31 = arith.extui %30 : vector<104x128xi1> to vector<104x128xi32>
    %32 = arith.sitofp %31 : vector<104x128xi32> to vector<104x128xf32>
    %cst_12 = arith.constant dense<0.000000e+00> : vector<128xf32>
    %33 = vector.multi_reduction <add>, %32, %cst_12 [0] : vector<104x128xf32> to vector<128xf32>
    %34 = vector.shape_cast %33 : vector<128xf32> to vector<1x128xf32>
    %35 = vector.shape_cast %34 : vector<1x128xf32> to vector<1x128xf32>
    %36 = vector.broadcast %35 : vector<1x128xf32> to vector<8x128xf32>
    %c0_13 = arith.constant 0 : index
    %c0_14 = arith.constant 0 : index
    %37 = vector.load %arg5[%c0_13, %c0_14] : memref<8x128xf32, #tpu.memory_space<vmem>>, vector<8x128xf32>
    tpu.vector_store %arg5[%c0_13, %c0_14], %36 {strides = array<i32>} : memref<8x128xf32, #tpu.memory_space<vmem>>, vector<8x128xf32>,
    return
  }
  func.func @transform_0(%arg0: i32) -> (i32, i32) {
    %c0_i32 = arith.constant 0 : i32
    %c0_i32_0 = arith.constant 0 : i32
    return %arg0, %c0_i32 : i32, i32
  }
  func.func @transform_1(%arg0: i32) -> (i32, i32) {
    %c0_i32 = arith.constant 0 : i32
    %c0_i32_0 = arith.constant 0 : i32
    return %arg0, %c0_i32 : i32, i32
  }
  func.func @transform_2(%arg0: i32) -> (i32, i32) {
    %c0_i32 = arith.constant 0 : i32
    %c0_i32_0 = arith.constant 0 : i32
    %c0_i32_1 = arith.constant 0 : i32
    return %c0_i32, %c0_i32_0 : i32, i32
  }
  func.func @transform_3(%arg0: i32) -> (i32, i32) {
    %c0_i32 = arith.constant 0 : i32
    %c0_i32_0 = arith.constant 0 : i32
    return %arg0, %c0_i32 : i32, i32
  }
  func.func @transform_4(%arg0: i32) -> (i32, i32) {
    %c0_i32 = arith.constant 0 : i32
    %c0_i32_0 = arith.constant 0 : i32
    return %arg0, %c0_i32 : i32, i32
  }
}

</mosaic_0001>

<llo_original>
// kernel: regbn_forward.1
$region0: #{regbn_forward.1}
  #allocation0 [shape = 'u32[]', space=smem, size = 0x4, offset = 0x4, fixed_abs, tag = 'smem constant byte address 0x4 - core index']
  #allocation1 [shape = 'u32[144,128]{1,0:T(1,128)}', space=vmem, size = 0x12000, scoped, tag = 'internal scratch']
  %s0 = inlined_call_operand.vmem [shape: f32[100,128], index: 0, kind: input, shape index: {}]
  %s1 = inlined_call_operand.vmem [shape: f32[100,16], index: 1, kind: input, shape index: {}]
  %s2 = inlined_call_operand.vmem [shape: f32[16,128], index: 2, kind: input, shape index: {}]
  %s3 = inlined_call_operand.hbm [shape: f32[100,128], index: 3, kind: output, shape index: {0}]
  %s4 = inlined_call_operand.vmem [shape: f32[8,128], index: 4, kind: output, shape index: {1}]
  %5 = xla_tuple %s3, %s4
  %s6 = sld [smem:[#allocation0]]
  $region30: #{regbn_forward.1} parent=0
    _
  %s8 = ssub.s32 1, %s6
  %s9 = scalar_select 0, %s8, %s6
  $region1: #{regbn_forward.1} parent=0
    #allocation2 [shape = 'u8[53248]{0}', space=vmem, size = 0xd000, scoped, tag = 'output window, operand 0, single buffered']
    #allocation3 [shape = 's32[1]{0}', space=sflag, size = 0x4, scoped, tag = 'scoped memory for regbn_forward.1']
    %10 = vsyncpa [#allocation3], 0
    // Predicated region
    $region2: #{regbn_forward.1} parent=1 // pred_check
      _
    $region3: #{regbn_forward.1} parent=1 // pred_check_branch
      %12 = sbr.rel (0) target = $region5
    $region4: #{regbn_forward.1} parent=1 // pred_region
      _
    $region5: #{regbn_forward.1} parent=1 // pred_fallthru
      _
    // Predicated region
    $region6: #{regbn_forward.1} parent=1 // pred_check
      _
    $region7: #{regbn_forward.1} parent=1 // pred_check_branch
      %14 = sbr.rel (0) target = $region9
    $region8: #{regbn_forward.1} parent=1 // pred_region
      _
    $region9: #{regbn_forward.1} parent=1 // pred_fallthru
      _
    // Predicated region
    $region10: #{regbn_forward.1} parent=1 // pred_check
      _
    $region11: #{regbn_forward.1} parent=1 // pred_check_branch
      %16 = sbr.rel (0) target = $region13
    $region12: #{regbn_forward.1} parent=1 // pred_region
      _
    $region13: #{regbn_forward.1} parent=1 // pred_fallthru
      _
    %v17 = vld [vmem:[%s0] sm:$0xff]
    %v18 = vld [vmem:[%s0 + $0x8] sm:$0xff]
    %v19 = vld [vmem:[%s0 + $0x10] sm:$0xff]
    %v20 = vld [vmem:[%s0 + $0x18] sm:$0xff]
    %v21 = vld [vmem:[%s0 + $0x20] sm:$0xff]
    %v22 = vld [vmem:[%s0 + $0x28] sm:$0xff]
    %v23 = vld [vmem:[%s0 + $0x30] sm:$0xff]
    %v24 = vld [vmem:[%s0 + $0x38] sm:$0xff]
    %v25 = vld [vmem:[%s0 + $0x40] sm:$0xff]
    %v26 = vld [vmem:[%s0 + $0x48] sm:$0xff]
    %v27 = vld [vmem:[%s0 + $0x50] sm:$0xff]
    %v28 = vld [vmem:[%s0 + $0x58] sm:$0xff]
    %v29 = vld [vmem:[%s0 + $0x60] sm:$0xff]
    %v30 = vld [vmem:[%s1] sm:$0xff]
    %v31 = vld [vmem:[%s1 + $0x8] sm:$0xff]
    %v32 = vld [vmem:[%s1 + $0x10] sm:$0xff]
    %v33 = vld [vmem:[%s1 + $0x18] sm:$0xff]
    %v34 = vld [vmem:[%s1 + $0x20] sm:$0xff]
    %v35 = vld [vmem:[%s1 + $0x28] sm:$0xff]
    %v36 = vld [vmem:[%s1 + $0x30] sm:$0xff]
    %v37 = vld [vmem:[%s1 + $0x38] sm:$0xff]
    %v38 = vld [vmem:[%s1 + $0x40] sm:$0xff]
    %v39 = vld [vmem:[%s1 + $0x48] sm:$0xff]
    %v40 = vld [vmem:[%s1 + $0x50] sm:$0xff]
    %v41 = vld [vmem:[%s1 + $0x58] sm:$0xff]
    %v42 = vld [vmem:[%s1 + $0x60] sm:$0xff]
    %v43 = vld [vmem:[%s2] sm:$0xff]
    %v44 = vld [vmem:[%s2 + $0x8] sm:$0xff]
    %vm45 = vcmask 130048
    %v47 = vsel %vm45, %v30, 0
    %v50 = vsel %vm45, %v31, 0
    %v53 = vsel %vm45, %v32, 0
    %v56 = vsel %vm45, %v33, 0
    %v59 = vsel %vm45, %v34, 0
    %v62 = vsel %vm45, %v35, 0
    %v65 = vsel %vm45, %v36, 0
    %v68 = vsel %vm45, %v37, 0
    %v71 = vsel %vm45, %v38, 0
    %v74 = vsel %vm45, %v39, 0
    %v77 = vsel %vm45, %v40, 0
    %v80 = vsel %vm45, %v41, 0
    %v83 = vsel %vm45, %v42, 0
    %85 = vmatprep.subr.mxu0 0.0
    %v86 = vand.u32 %v43, 4294901760
    %87 = vmatpush1.msra.mxu0 %v86
    %88 = vmatprep.subr.mxu0 0.0
    %v89 = vand.u32 %v44, 4294901760
    %90 = vmatpush1.msra.mxu0 %v89
    %91 = vmatprep.subr.mxu0 0.0
    %92 = vmatpush1.msra.mxu0 0.0
    %93 = vmatprep.subr.mxu0 0.0
    %94 = vmatpush1.msra.mxu0 0.0
    %95 = vmatprep.subr.mxu0 0.0
    %96 = vmatpush1.msra.mxu0 0.0
    %97 = vmatprep.subr.mxu0 0.0
    %98 = vmatpush1.msra.mxu0 0.0
    %99 = vmatprep.subr.mxu0 0.0
    %100 = vmatpush1.msra.mxu0 0.0
    %101 = vmatprep.subr.mxu0 0.0
    %102 = vmatpush1.msra.mxu0 0.0
    %103 = vmatprep.subr.mxu0 0.0
    %104 = vmatpush1.msra.mxu0 0.0
    %105 = vmatprep.subr.mxu0 0.0
    %106 = vmatpush1.msra.mxu0 0.0
    %107 = vmatprep.subr.mxu0 0.0
    %108 = vmatpush1.msra.mxu0 0.0
    %109 = vmatprep.subr.mxu0 0.0
    %110 = vmatpush1.msra.mxu0 0.0
    %111 = vmatprep.subr.mxu0 0.0
    %112 = vmatpush1.msra.mxu0 0.0
    %113 = vmatprep.subr.mxu0 0.0
    %114 = vmatpush1.msra.mxu0 0.0
    %115 = vmatprep.subr.mxu0 0.0
    %116 = vmatpush1.msra.mxu0 0.0
    %117 = vmatprep.subr.mxu0 0.0
    %118 = vmatpush1.msra.mxu0 0.0
    %119 = vmatprep.subr.mxu0 0.0
    %120 = vmatpush1.msra.mxu0 0.0
    %121 = vmatprep.subr.mxu0 0.0
    %122 = vmatpush1.msra.mxu0 0.0
    %123 = vmatprep.subr.mxu0 0.0
    %124 = vmatpush1.msra.mxu0 0.0
    %125 = vmatprep.subr.mxu0 0.0
    %126 = vmatpush1.msra.mxu0 0.0
    %127 = vmatprep.subr.mxu0 0.0
    %128 = vmatpush1.msra.mxu0 0.0
    %129 = vmatprep.subr.mxu0 0.0
    %130 = vmatpush1.msra.mxu0 0.0
    %131 = vmatprep.subr.mxu0 0.0
    %132 = vmatpush1.msra.mxu0 0.0
    %133 = vmatprep.subr.mxu0 0.0
    %134 = vmatpush1.msra.mxu0 0.0
    %135 = vmatprep.subr.mxu0 0.0
    %136 = vmatpush1.msra.mxu0 0.0
    %137 = vmatprep.subr.mxu0 0.0
    %138 = vmatpush1.msra.mxu0 0.0
    %139 = vmatprep.subr.mxu0 0.0
    %140 = vmatpush1.msra.mxu0 0.0
    %141 = vmatprep.subr.mxu0 0.0
    %142 = vmatpush1.msra.mxu0 0.0
    %143 = vmatprep.subr.mxu0 0.0
    %144 = vmatpush1.msra.mxu0 0.0
    %145 = vmatprep.subr.mxu0 0.0
    %146 = vmatpush1.msra.mxu0 0.0
    %147 = vmatprep.subr.mxu0 0.0
    %148 = vmatpush1.msra.mxu0 0.0
    %149 = vmatprep.subr.mxu0 0.0
    %150 = vmatpush1.msra.mxu0 0.0
    %151 = vmatprep.mubr.f32.mxu0 0.0
    %v152 = vand.u32 %v47, 4294901760
    %v153 = vsub.f32 %v47, %v152
    %v154 = vand.u32 %v153, 4294901760
    %v155 = vsub.f32 %v153, %v154
    %v156 = vand.u32 %v155, 4294901760
    %157 = vmatmul.mubr.f32.gmra.mrb[0].mxu0 %v156
    %v158 = vpop.f32.mrb[0].mxu0
    %v159 = vadd.f32 0.0, %v158
    %v160 = vpop.f32.mrb[0].mxu0
    %161 = vmatprep.mubr.f32.mxu0 0.0
    %v162 = vand.u32 %v50, 4294901760
    %v163 = vsub.f32 %v50, %v162
    %v164 = vand.u32 %v163, 4294901760
    %v165 = vsub.f32 %v163, %v164
    %v166 = vand.u32 %v165, 4294901760
    %167 = vmatmul.mubr.f32.gmra.mrb[0].mxu0 %v166
    %v168 = vpop.f32.mrb[0].mxu0
    %v169 = vadd.f32 0.0, %v168
    %v170 = vpop.f32.mrb[0].mxu0
    %171 = vmatprep.mubr.f32.mxu0 0.0
    %v172 = vand.u32 %v53, 4294901760
    %v173 = vsub.f32 %v53, %v172
    %v174 = vand.u32 %v173, 4294901760
    %v175 = vsub.f32 %v173, %v174
    %v176 = vand.u32 %v175, 4294901760
    %177 = vmatmul.mubr.f32.gmra.mrb[0].mxu0 %v176
    %v178 = vpop.f32.mrb[0].mxu0
    %v179 = vadd.f32 0.0, %v178
    %v180 = vpop.f32.mrb[0].mxu0
    %181 = vmatprep.mubr.f32.mxu0 0.0
    %v182 = vand.u32 %v56, 4294901760
    %v183 = vsub.f32 %v56, %v182
    %v184 = vand.u32 %v183, 4294901760
    %v185 = vsub.f32 %v183, %v184
    %v186 = vand.u32 %v185, 4294901760
    %187 = vmatmul.mubr.f32.gmra.mrb[0].mxu0 %v186
    %v188 = vpop.f32.mrb[0].mxu0
    %v189 = vadd.f32 0.0, %v188
    %v190 = vpop.f32.mrb[0].mxu0
    %191 = vmatprep.mubr.f32.mxu0 0.0
    %v192 = vand.u32 %v59, 4294901760
    %v193 = vsub.f32 %v59, %v192
    %v194 = vand.u32 %v193, 4294901760
    %v195 = vsub.f32 %v193, %v194
    %v196 = vand.u32 %v195, 4294901760
    %197 = vmatmul.mubr.f32.gmra.mrb[0].mxu0 %v196
    %v198 = vpop.f32.mrb[0].mxu0
    %v199 = vadd.f32 0.0, %v198
    %v200 = vpop.f32.mrb[0].mxu0
    %201 = vmatprep.mubr.f32.mxu0 0.0
    %v202 = vand.u32 %v62, 4294901760
    %v203 = vsub.f32 %v62, %v202
    %v204 = vand.u32 %v203, 4294901760
    %v205 = vsub.f32 %v203, %v204
    %v206 = vand.u32 %v205, 4294901760
    %207 = vmatmul.mubr.f32.gmra.mrb[0].mxu0 %v206
    %v208 = vpop.f32.mrb[0].mxu0
    %v209 = vadd.f32 0.0, %v208
    %v210 = vpop.f32.mrb[0].mxu0
    %211 = vmatprep.mubr.f32.mxu0 0.0
    %v212 = vand.u32 %v65, 4294901760
    %v213 = vsub.f32 %v65, %v212
    %v214 = vand.u32 %v213, 4294901760
    %v215 = vsub.f32 %v213, %v214
    %v216 = vand.u32 %v215, 4294901760
    %217 = vmatmul.mubr.f32.gmra.mrb[0].mxu0 %v216
    %v218 = vpop.f32.mrb[0].mxu0
    %v219 = vadd.f32 0.0, %v218
    %v220 = vpop.f32.mrb[0].mxu0
    %221 = vmatprep.mubr.f32.mxu0 0.0
    %v222 = vand.u32 %v68, 4294901760
    %v223 = vsub.f32 %v68, %v222
    %v224 = vand.u32 %v223, 4294901760
    %v225 = vsub.f32 %v223, %v224
    %v226 = vand.u32 %v225, 4294901760
    %227 = vmatmul.mubr.f32.gmra.mrb[0].mxu0 %v226
    %v228 = vpop.f32.mrb[0].mxu0
    %v229 = vadd.f32 0.0, %v228
    %v230 = vpop.f32.mrb[0].mxu0
    %231 = vmatprep.mubr.f32.mxu0 0.0
    %v232 = vand.u32 %v71, 4294901760
    %v233 = vsub.f32 %v71, %v232
    %v234 = vand.u32 %v233, 4294901760
    %v235 = vsub.f32 %v233, %v234
    %v236 = vand.u32 %v235, 4294901760
    %237 = vmatmul.mubr.f32.gmra.mrb[0].mxu0 %v236
    %v238 = vpop.f32.mrb[0].mxu0
    %v239 = vadd.f32 0.0, %v238
    %v240 = vpop.f32.mrb[0].mxu0
    %241 = vmatprep.mubr.f32.mxu0 0.0
    %v242 = vand.u32 %v74, 4294901760
    %v243 = vsub.f32 %v74, %v242
    %v244 = vand.u32 %v243, 4294901760
    %v245 = vsub.f32 %v243, %v244
    %v246 = vand.u32 %v245, 4294901760
    %247 = vmatmul.mubr.f32.gmra.mrb[0].mxu0 %v246
    %v248 = vpop.f32.mrb[0].mxu0
    %v249 = vadd.f32 0.0, %v248
    %v250 = vpop.f32.mrb[0].mxu0
    %251 = vmatprep.mubr.f32.mxu0 0.0
    %v252 = vand.u32 %v77, 4294901760
    %v253 = vsub.f32 %v77, %v252
    %v254 = vand.u32 %v253, 4294901760
    %v255 = vsub.f32 %v253, %v254
    %v256 = vand.u32 %v255, 4294901760
    %257 = vmatmul.mubr.f32.gmra.mrb[0].mxu0 %v256
    %v258 = vpop.f32.mrb[0].mxu0
    %v259 = vadd.f32 0.0, %v258
    %v260 = vpop.f32.mrb[0].mxu0
    %261 = vmatprep.mubr.f32.mxu0 0.0
    %v262 = vand.u32 %v80, 4294901760
    %v263 = vsub.f32 %v80, %v262
    %v264 = vand.u32 %v263, 4294901760
    %v265 = vsub.f32 %v263, %v264
    %v266 = vand.u32 %v265, 4294901760
    %267 = vmatmul.mubr.f32.gmra.mrb[0].mxu0 %v266
    %v268 = vpop.f32.mrb[0].mxu0
    %v269 = vadd.f32 0.0, %v268
    %v270 = vpop.f32.mrb[0].mxu0
    %271 = vmatprep.mubr.f32.mxu0 0.0
    %v272 = vand.u32 %v83, 4294901760
    %v273 = vsub.f32 %v83, %v272
    %v274 = vand.u32 %v273, 4294901760
    %v275 = vsub.f32 %v273, %v274
    %v276 = vand.u32 %v275, 4294901760
    %277 = vmatmul.mubr.f32.gmra.mrb[0].mxu0 %v276
    %v278 = vpop.f32.mrb[0].mxu0
    %v279 = vadd.f32 0.0, %v278
    %v280 = vpop.f32.mrb[0].mxu0
    %281 = vdwg.mxu0
    %282 = vmatprep.subr.mxu0 0.0
    %v283 = vand.u32 %v43, 4294901760
    %v284 = vsub.f32 %v43, %v283
    %v285 = vand.u32 %v284, 4294901760
    %v286 = vsub.f32 %v284, %v285
    %v287 = vand.u32 %v286, 4294901760
    %288 = vmatpush1.msra.mxu0 %v287
    %289 = vmatprep.subr.mxu0 0.0
    %v290 = vand.u32 %v44, 4294901760
    %v291 = vsub.f32 %v44, %v290
    %v292 = vand.u32 %v291, 4294901760
    %v293 = vsub.f32 %v291, %v292
    %v294 = vand.u32 %v293, 4294901760
    %295 = vmatpush1.msra.mxu0 %v294
    %296 = vmatprep.subr.mxu0 0.0
    %297 = vmatpush1.msra.mxu0 0.0
    %298 = vmatprep.subr.mxu0 0.0
    %299 = vmatpush1.msra.mxu0 0.0
    %300 = vmatprep.subr.mxu0 0.0
    %301 = vmatpush1.msra.mxu0 0.0
    %302 = vmatprep.subr.mxu0 0.0
    %303 = vmatpush1.msra.mxu0 0.0
    %304 = vmatprep.subr.mxu0 0.0
    %305 = vmatpush1.msra.mxu0 0.0
    %306 = vmatprep.subr.mxu0 0.0
    %307 = vmatpush1.msra.mxu0 0.0
    %308 = vmatprep.subr.mxu0 0.0
    %309 = vmatpush1.msra.mxu0 0.0
    %310 = vmatprep.subr.mxu0 0.0
    %311 = vmatpush1.msra.mxu0 0.0
    %312 = vmatprep.subr.mxu0 0.0
    %313 = vmatpush1.msra.mxu0 0.0
    %314 = vmatprep.subr.mxu0 0.0
    %315 = vmatpush1.msra.mxu0 0.0
    %316 = vmatprep.subr.mxu0 0.0
    %317 = vmatpush1.msra.mxu0 0.0
    %318 = vmatprep.subr.mxu0 0.0
    %319 = vmatpush1.msra.mxu0 0.0
    %320 = vmatprep.subr.mxu0 0.0
    %321 = vmatpush1.msra.mxu0 0.0
    %322 = vmatprep.subr.mxu0 0.0
    %323 = vmatpush1.msra.mxu0 0.0
    %324 = vmatprep.subr.mxu0 0.0
    %325 = vmatpush1.msra.mxu0 0.0
    %326 = vmatprep.subr.mxu0 0.0
    %327 = vmatpush1.msra.mxu0 0.0
    %328 = vmatprep.subr.mxu0 0.0
    %329 = vmatpush1.msra.mxu0 0.0
    %330 = vmatprep.subr.mxu0 0.0
    %331 = vmatpush1.msra.mxu0 0.0
    %332 = vmatprep.subr.mxu0 0.0
    %333 = vmatpush1.msra.mxu0 0.0
    %334 = vmatprep.subr.mxu0 0.0
    %335 = vmatpush1.msra.mxu0 0.0
    %336 = vmatprep.subr.mxu0 0.0
    %337 = vmatpush1.msra.mxu0 0.0
    %338 = vmatprep.subr.mxu0 0.0
    %339 = vmatpush1.msra.mxu0 0.0
    %340 = vmatprep.subr.mxu0 0.0
    %341 = vmatpush1.msra.mxu0 0.0
    %342 = vmatprep.subr.mxu0 0.0
    %343 = vmatpush1.msra.mxu0 0.0
    %344 = vmatprep.subr.mxu0 0.0
    %345 = vmatpush1.msra.mxu0 0.0
    %346 = vmatprep.subr.mxu0 0.0
    %347 = vmatpush1.msra.mxu0 0.0
    %348 = vmatprep.subr.mxu0 0.0
    %349 = vmatpush1.msra.mxu0 0.0
    %350 = vmatprep.subr.mxu0 0.0
    %351 = vmatpush1.msra.mxu0 0.0
    %352 = vmatprep.subr.mxu0 0.0
    %353 = vmatpush1.msra.mxu0 0.0
    %354 = vmatprep.subr.mxu0 0.0
    %355 = vmatpush1.msra.mxu0 0.0
    %356 = vmatprep.mubr.f32.mxu0 0.0
    %v357 = vand.u32 %v47, 4294901760
    %358 = vmatmul.mubr.f32.gmra.mrb[0].mxu0 %v357
    %v359 = vpop.f32.mrb[0].mxu0
    %v360 = vadd.f32 %v159, %v359
    %v361 = vpop.f32.mrb[0].mxu0
    %362 = vmatprep.mubr.f32.mxu0 0.0
    %v363 = vand.u32 %v50, 4294901760
    %364 = vmatmul.mubr.f32.gmra.mrb[0].mxu0 %v363
    %v365 = vpop.f32.mrb[0].mxu0
    %v366 = vadd.f32 %v169, %v365
    %v367 = vpop.f32.mrb[0].mxu0
    %368 = vmatprep.mubr.f32.mxu0 0.0
    %v369 = vand.u32 %v53, 4294901760
    %370 = vmatmul.mubr.f32.gmra.mrb[0].mxu0 %v369
    %v371 = vpop.f32.mrb[0].mxu0
    %v372 = vadd.f32 %v179, %v371
    %v373 = vpop.f32.mrb[0].mxu0
    %374 = vmatprep.mubr.f32.mxu0 0.0
    %v375 = vand.u32 %v56, 4294901760
    %376 = vmatmul.mubr.f32.gmra.mrb[0].mxu0 %v375
    %v377 = vpop.f32.mrb[0].mxu0
    %v378 = vadd.f32 %v189, %v377
    %v379 = vpop.f32.mrb[0].mxu0
    %380 = vmatprep.mubr.f32.mxu0 0.0
    %v381 = vand.u32 %v59, 4294901760
    %382 = vmatmul.mubr.f32.gmra.mrb[0].mxu0 %v381
    %v383 = vpop.f32.mrb[0].mxu0
    %v384 = vadd.f32 %v199, %v383
    %v385 = vpop.f32.mrb[0].mxu0
    %386 = vmatprep.mubr.f32.mxu0 0.0
    %v387 = vand.u32 %v62, 4294901760
    %388 = vmatmul.mubr.f32.gmra.mrb[0].mxu0 %v387
    %v389 = vpop.f32.mrb[0].mxu0
    %v390 = vadd.f32 %v209, %v389
    %v391 = vpop.f32.mrb[0].mxu0
    %392 = vmatprep.mubr.f32.mxu0 0.0
    %v393 = vand.u32 %v65, 4294901760
    %394 = vmatmul.mubr.f32.gmra.mrb[0].mxu0 %v393
    %v395 = vpop.f32.mrb[0].mxu0
    %v396 = vadd.f32 %v219, %v395
    %v397 = vpop.f32.mrb[0].mxu0
    %398 = vmatprep.mubr.f32.mxu0 0.0
    %v399 = vand.u32 %v68, 4294901760
    %400 = vmatmul.mubr.f32.gmra.mrb[0].mxu0 %v399
    %v401 = vpop.f32.mrb[0].mxu0
    %v402 = vadd.f32 %v229, %v401
    %v403 = vpop.f32.mrb[0].mxu0
    %404 = vmatprep.mubr.f32.mxu0 0.0
    %v405 = vand.u32 %v71, 4294901760
    %406 = vmatmul.mubr.f32.gmra.mrb[0].mxu0 %v405
    %v407 = vpop.f32.mrb[0].mxu0
    %v408 = vadd.f32 %v239, %v407
    %v409 = vpop.f32.mrb[0].mxu0
    %410 = vmatprep.mubr.f32.mxu0 0.0
    %v411 = vand.u32 %v74, 4294901760
    %412 = vmatmul.mubr.f32.gmra.mrb[0].mxu0 %v411
    %v413 = vpop.f32.mrb[0].mxu0
    %v414 = vadd.f32 %v249, %v413
    %v415 = vpop.f32.mrb[0].mxu0
    %416 = vmatprep.mubr.f32.mxu0 0.0
    %v417 = vand.u32 %v77, 4294901760
    %418 = vmatmul.mubr.f32.gmra.mrb[0].mxu0 %v417
    %v419 = vpop.f32.mrb[0].mxu0
    %v420 = vadd.f32 %v259, %v419
    %v421 = vpop.f32.mrb[0].mxu0
    %422 = vmatprep.mubr.f32.mxu0 0.0
    %v423 = vand.u32 %v80, 4294901760
    %424 = vmatmul.mubr.f32.gmra.mrb[0].mxu0 %v423
    %v425 = vpop.f32.mrb[0].mxu0
    %v426 = vadd.f32 %v269, %v425
    %v427 = vpop.f32.mrb[0].mxu0
    %428 = vmatprep.mubr.f32.mxu0 0.0
    %v429 = vand.u32 %v83, 4294901760
    %430 = vmatmul.mubr.f32.gmra.mrb[0].mxu0 %v429
    %v431 = vpop.f32.mrb[0].mxu0
    %v432 = vadd.f32 %v279, %v431
    %v433 = vpop.f32.mrb[0].mxu0
    %434 = vdwg.mxu0
    %435 = vmatprep.subr.mxu0 0.0
    %v436 = vand.u32 %v43, 4294901760
    %v437 = vsub.f32 %v43, %v436
    %438 = vmatpush1.msra.mxu0 %v437
    %439 = vmatprep.subr.mxu0 0.0
    %v440 = vand.u32 %v44, 4294901760
    %v441 = vsub.f32 %v44, %v440
    %442 = vmatpush1.msra.mxu0 %v441
    %443 = vmatprep.subr.mxu0 0.0
    %444 = vmatpush1.msra.mxu0 0.0
    %445 = vmatprep.subr.mxu0 0.0
    %446 = vmatpush1.msra.mxu0 0.0
    %447 = vmatprep.subr.mxu0 0.0
    %448 = vmatpush1.msra.mxu0 0.0
    %449 = vmatprep.subr.mxu0 0.0
    %450 = vmatpush1.msra.mxu0 0.0
    %451 = vmatprep.subr.mxu0 0.0
    %452 = vmatpush1.msra.mxu0 0.0
    %453 = vmatprep.subr.mxu0 0.0
    %454 = vmatpush1.msra.mxu0 0.0
    %455 = vmatprep.subr.mxu0 0.0
    %456 = vmatpush1.msra.mxu0 0.0
    %457 = vmatprep.subr.mxu0 0.0
    %458 = vmatpush1.msra.mxu0 0.0
    %459 = vmatprep.subr.mxu0 0.0
    %460 = vmatpush1.msra.mxu0 0.0
    %461 = vmatprep.subr.mxu0 0.0
    %462 = vmatpush1.msra.mxu0 0.0
    %463 = vmatprep.subr.mxu0 0.0
    %464 = vmatpush1.msra.mxu0 0.0
    %465 = vmatprep.subr.mxu0 0.0
    %466 = vmatpush1.msra.mxu0 0.0
    %467 = vmatprep.subr.mxu0 0.0
    %468 = vmatpush1.msra.mxu0 0.0
    %469 = vmatprep.subr.mxu0 0.0
    %470 = vmatpush1.msra.mxu0 0.0
    %471 = vmatprep.subr.mxu0 0.0
    %472 = vmatpush1.msra.mxu0 0.0
    %473 = vmatprep.subr.mxu0 0.0
    %474 = vmatpush1.msra.mxu0 0.0
    %475 = vmatprep.subr.mxu0 0.0
    %476 = vmatpush1.msra.mxu0 0.0
    %477 = vmatprep.subr.mxu0 0.0
    %478 = vmatpush1.msra.mxu0 0.0
    %479 = vmatprep.subr.mxu0 0.0
    %480 = vmatpush1.msra.mxu0 0.0
    %481 = vmatprep.subr.mxu0 0.0
    %482 = vmatpush1.msra.mxu0 0.0
    %483 = vmatprep.subr.mxu0 0.0
    %484 = vmatpush1.msra.mxu0 0.0
    %485 = vmatprep.subr.mxu0 0.0
    %486 = vmatpush1.msra.mxu0 0.0
    %487 = vmatprep.subr.mxu0 0.0
    %488 = vmatpush1.msra.mxu0 0.0
    %489 = vmatprep.subr.mxu0 0.0
    %490 = vmatpush1.msra.mxu0 0.0
    %491 = vmatprep.subr.mxu0 0.0
    %492 = vmatpush1.msra.mxu0 0.0
    %493 = vmatprep.subr.mxu0 0.0
    %494 = vmatpush1.msra.mxu0 0.0
    %495 = vmatprep.subr.mxu0 0.0
    %496 = vmatpush1.msra.mxu0 0.0
    %497 = vmatprep.subr.mxu0 0.0
    %498 = vmatpush1.msra.mxu0 0.0
    %499 = vmatprep.subr.mxu0 0.0
    %500 = vmatpush1.msra.mxu0 0.0
    %501 = vmatprep.subr.mxu0 0.0
    %502 = vmatpush1.msra.mxu0 0.0
    %503 = vmatprep.mubr.f32.mxu0 0.0
    %v504 = vand.u32 %v47, 4294901760
    %v505 = vsub.f32 %v47, %v504
    %506 = vmatmul.mubr.f32.gmra.mrb[0].mxu0 %v505
    %v507 = vpop.f32.mrb[0].mxu0
    %v508 = vadd.f32 %v360, %v507
    %v509 = vpop.f32.mrb[0].mxu0
    %510 = vmatprep.mubr.f32.mxu0 0.0
    %v511 = vand.u32 %v50, 4294901760
    %v512 = vsub.f32 %v50, %v511
    %513 = vmatmul.mubr.f32.gmra.mrb[0].mxu0 %v512
    %v514 = vpop.f32.mrb[0].mxu0
    %v515 = vadd.f32 %v366, %v514
    %v516 = vpop.f32.mrb[0].mxu0
    %517 = vmatprep.mubr.f32.mxu0 0.0
    %v518 = vand.u32 %v53, 4294901760
    %v519 = vsub.f32 %v53, %v518
    %520 = vmatmul.mubr.f32.gmra.mrb[0].mxu0 %v519
    %v521 = vpop.f32.mrb[0].mxu0
    %v522 = vadd.f32 %v372, %v521
    %v523 = vpop.f32.mrb[0].mxu0
    %524 = vmatprep.mubr.f32.mxu0 0.0
    %v525 = vand.u32 %v56, 4294901760
    %v526 = vsub.f32 %v56, %v525
    %527 = vmatmul.mubr.f32.gmra.mrb[0].mxu0 %v526
    %v528 = vpop.f32.mrb[0].mxu0
    %v529 = vadd.f32 %v378, %v528
    %v530 = vpop.f32.mrb[0].mxu0
    %531 = vmatprep.mubr.f32.mxu0 0.0
    %v532 = vand.u32 %v59, 4294901760
    %v533 = vsub.f32 %v59, %v532
    %534 = vmatmul.mubr.f32.gmra.mrb[0].mxu0 %v533
    %v535 = vpop.f32.mrb[0].mxu0
    %v536 = vadd.f32 %v384, %v535
    %v537 = vpop.f32.mrb[0].mxu0
    %538 = vmatprep.mubr.f32.mxu0 0.0
    %v539 = vand.u32 %v62, 4294901760
    %v540 = vsub.f32 %v62, %v539
    %541 = vmatmul.mubr.f32.gmra.mrb[0].mxu0 %v540
    %v542 = vpop.f32.mrb[0].mxu0
    %v543 = vadd.f32 %v390, %v542
    %v544 = vpop.f32.mrb[0].mxu0
    %545 = vmatprep.mubr.f32.mxu0 0.0
    %v546 = vand.u32 %v65, 4294901760
    %v547 = vsub.f32 %v65, %v546
    %548 = vmatmul.mubr.f32.gmra.mrb[0].mxu0 %v547
    %v549 = vpop.f32.mrb[0].mxu0
    %v550 = vadd.f32 %v396, %v549
    %v551 = vpop.f32.mrb[0].mxu0
    %552 = vmatprep.mubr.f32.mxu0 0.0
    %v553 = vand.u32 %v68, 4294901760
    %v554 = vsub.f32 %v68, %v553
    %555 = vmatmul.mubr.f32.gmra.mrb[0].mxu0 %v554
    %v556 = vpop.f32.mrb[0].mxu0
    %v557 = vadd.f32 %v402, %v556
    %v558 = vpop.f32.mrb[0].mxu0
    %559 = vmatprep.mubr.f32.mxu0 0.0
    %v560 = vand.u32 %v71, 4294901760
    %v561 = vsub.f32 %v71, %v560
    %562 = vmatmul.mubr.f32.gmra.mrb[0].mxu0 %v561
    %v563 = vpop.f32.mrb[0].mxu0
    %v564 = vadd.f32 %v408, %v563
    %v565 = vpop.f32.mrb[0].mxu0
    %566 = vmatprep.mubr.f32.mxu0 0.0
    %v567 = vand.u32 %v74, 4294901760
    %v568 = vsub.f32 %v74, %v567
    %569 = vmatmul.mubr.f32.gmra.mrb[0].mxu0 %v568
    %v570 = vpop.f32.mrb[0].mxu0
    %v571 = vadd.f32 %v414, %v570
    %v572 = vpop.f32.mrb[0].mxu0
    %573 = vmatprep.mubr.f32.mxu0 0.0
    %v574 = vand.u32 %v77, 4294901760
    %v575 = vsub.f32 %v77, %v574
    %576 = vmatmul.mubr.f32.gmra.mrb[0].mxu0 %v575
    %v577 = vpop.f32.mrb[0].mxu0
    %v578 = vadd.f32 %v420, %v577
    %v579 = vpop.f32.mrb[0].mxu0
    %580 = vmatprep.mubr.f32.mxu0 0.0
    %v581 = vand.u32 %v80, 4294901760
    %v582 = vsub.f32 %v80, %v581
    %583 = vmatmul.mubr.f32.gmra.mrb[0].mxu0 %v582
    %v584 = vpop.f32.mrb[0].mxu0
    %v585 = vadd.f32 %v426, %v584
    %v586 = vpop.f32.mrb[0].mxu0
    %587 = vmatprep.mubr.f32.mxu0 0.0
    %v588 = vand.u32 %v83, 4294901760
    %v589 = vsub.f32 %v83, %v588
    %590 = vmatmul.mubr.f32.gmra.mrb[0].mxu0 %v589
    %v591 = vpop.f32.mrb[0].mxu0
    %v592 = vadd.f32 %v432, %v591
    %v593 = vpop.f32.mrb[0].mxu0
    %594 = vdwg.mxu0
    %595 = vmatprep.subr.mxu0 0.0
    %v596 = vand.u32 %v43, 4294901760
    %597 = vmatpush1.msra.mxu0 %v596
    %598 = vmatprep.subr.mxu0 0.0
    %v599 = vand.u32 %v44, 4294901760
    %600 = vmatpush1.msra.mxu0 %v599
    %601 = vmatprep.subr.mxu0 0.0
    %602 = vmatpush1.msra.mxu0 0.0
    %603 = vmatprep.subr.mxu0 0.0
    %604 = vmatpush1.msra.mxu0 0.0
    %605 = vmatprep.subr.mxu0 0.0
    %606 = vmatpush1.msra.mxu0 0.0
    %607 = vmatprep.subr.mxu0 0.0
    %608 = vmatpush1.msra.mxu0 0.0
    %609 = vmatprep.subr.mxu0 0.0
    %610 = vmatpush1.msra.mxu0 0.0
    %611 = vmatprep.subr.mxu0 0.0
    %612 = vmatpush1.msra.mxu0 0.0
    %613 = vmatprep.subr.mxu0 0.0
    %614 = vmatpush1.msra.mxu0 0.0
    %615 = vmatprep.subr.mxu0 0.0
    %616 = vmatpush1.msra.mxu0 0.0
    %617 = vmatprep.subr.mxu0 0.0
    %618 = vmatpush1.msra.mxu0 0.0
    %619 = vmatprep.subr.mxu0 0.0
    %620 = vmatpush1.msra.mxu0 0.0
    %621 = vmatprep.subr.mxu0 0.0
    %622 = vmatpush1.msra.mxu0 0.0
    %623 = vmatprep.subr.mxu0 0.0
    %624 = vmatpush1.msra.mxu0 0.0
    %625 = vmatprep.subr.mxu0 0.0
    %626 = vmatpush1.msra.mxu0 0.0
    %627 = vmatprep.subr.mxu0 0.0
    %628 = vmatpush1.msra.mxu0 0.0
    %629 = vmatprep.subr.mxu0 0.0
    %630 = vmatpush1.msra.mxu0 0.0
    %631 = vmatprep.subr.mxu0 0.0
    %632 = vmatpush1.msra.mxu0 0.0
    %633 = vmatprep.subr.mxu0 0.0
    %634 = vmatpush1.msra.mxu0 0.0
    %635 = vmatprep.subr.mxu0 0.0
    %636 = vmatpush1.msra.mxu0 0.0
    %637 = vmatprep.subr.mxu0 0.0
    %638 = vmatpush1.msra.mxu0 0.0
    %639 = vmatprep.subr.mxu0 0.0
    %640 = vmatpush1.msra.mxu0 0.0
    %641 = vmatprep.subr.mxu0 0.0
    %642 = vmatpush1.msra.mxu0 0.0
    %643 = vmatprep.subr.mxu0 0.0
    %644 = vmatpush1.msra.mxu0 0.0
    %645 = vmatprep.subr.mxu0 0.0
    %646 = vmatpush1.msra.mxu0 0.0
    %647 = vmatprep.subr.mxu0 0.0
    %648 = vmatpush1.msra.mxu0 0.0
    %649 = vmatprep.subr.mxu0 0.0
    %650 = vmatpush1.msra.mxu0 0.0
    %651 = vmatprep.subr.mxu0 0.0
    %652 = vmatpush1.msra.mxu0 0.0
    %653 = vmatprep.subr.mxu0 0.0
    %654 = vmatpush1.msra.mxu0 0.0
    %655 = vmatprep.subr.mxu0 0.0
    %656 = vmatpush1.msra.mxu0 0.0
    %657 = vmatprep.subr.mxu0 0.0
    %658 = vmatpush1.msra.mxu0 0.0
    %659 = vmatprep.subr.mxu0 0.0
    %660 = vmatpush1.msra.mxu0 0.0
    %661 = vmatprep.mubr.f32.mxu0 0.0
    %v662 = vand.u32 %v47, 4294901760
    %v663 = vsub.f32 %v47, %v662
    %v664 = vand.u32 %v663, 4294901760
    %665 = vmatmul.mubr.f32.gmra.mrb[0].mxu0 %v664
    %v666 = vpop.f32.mrb[0].mxu0
    %v667 = vadd.f32 %v508, %v666
    %v668 = vpop.f32.mrb[0].mxu0
    %669 = vmatprep.mubr.f32.mxu0 0.0
    %v670 = vand.u32 %v50, 4294901760
    %v671 = vsub.f32 %v50, %v670
    %v672 = vand.u32 %v671, 4294901760
    %673 = vmatmul.mubr.f32.gmra.mrb[0].mxu0 %v672
    %v674 = vpop.f32.mrb[0].mxu0
    %v675 = vadd.f32 %v515, %v674
    %v676 = vpop.f32.mrb[0].mxu0
    %677 = vmatprep.mubr.f32.mxu0 0.0
    %v678 = vand.u32 %v53, 4294901760
    %v679 = vsub.f32 %v53, %v678
    %v680 = vand.u32 %v679, 4294901760
    %681 = vmatmul.mubr.f32.gmra.mrb[0].mxu0 %v680
    %v682 = vpop.f32.mrb[0].mxu0
    %v683 = vadd.f32 %v522, %v682
    %v684 = vpop.f32.mrb[0].mxu0
    %685 = vmatprep.mubr.f32.mxu0 0.0
    %v686 = vand.u32 %v56, 4294901760
    %v687 = vsub.f32 %v56, %v686
    %v688 = vand.u32 %v687, 4294901760
    %689 = vmatmul.mubr.f32.gmra.mrb[0].mxu0 %v688
    %v690 = vpop.f32.mrb[0].mxu0
    %v691 = vadd.f32 %v529, %v690
    %v692 = vpop.f32.mrb[0].mxu0
    %693 = vmatprep.mubr.f32.mxu0 0.0
    %v694 = vand.u32 %v59, 4294901760
    %v695 = vsub.f32 %v59, %v694
    %v696 = vand.u32 %v695, 4294901760
    %697 = vmatmul.mubr.f32.gmra.mrb[0].mxu0 %v696
    %v698 = vpop.f32.mrb[0].mxu0
    %v699 = vadd.f32 %v536, %v698
    %v700 = vpop.f32.mrb[0].mxu0
    %701 = vmatprep.mubr.f32.mxu0 0.0
    %v702 = vand.u32 %v62, 4294901760
    %v703 = vsub.f32 %v62, %v702
    %v704 = vand.u32 %v703, 4294901760
    %705 = vmatmul.mubr.f32.gmra.mrb[0].mxu0 %v704
    %v706 = vpop.f32.mrb[0].mxu0
    %v707 = vadd.f32 %v543, %v706
    %v708 = vpop.f32.mrb[0].mxu0
    %709 = vmatprep.mubr.f32.mxu0 0.0
    %v710 = vand.u32 %v65, 4294901760
    %v711 = vsub.f32 %v65, %v710
    %v712 = vand.u32 %v711, 4294901760
    %713 = vmatmul.mubr.f32.gmra.mrb[0].mxu0 %v712
    %v714 = vpop.f32.mrb[0].mxu0
    %v715 = vadd.f32 %v550, %v714
    %v716 = vpop.f32.mrb[0].mxu0
    %717 = vmatprep.mubr.f32.mxu0 0.0
    %v718 = vand.u32 %v68, 4294901760
    %v719 = vsub.f32 %v68, %v718
    %v720 = vand.u32 %v719, 4294901760
    %721 = vmatmul.mubr.f32.gmra.mrb[0].mxu0 %v720
    %v722 = vpop.f32.mrb[0].mxu0
    %v723 = vadd.f32 %v557, %v722
    %v724 = vpop.f32.mrb[0].mxu0
    %725 = vmatprep.mubr.f32.mxu0 0.0
    %v726 = vand.u32 %v71, 4294901760
    %v727 = vsub.f32 %v71, %v726
    %v728 = vand.u32 %v727, 4294901760
    %729 = vmatmul.mubr.f32.gmra.mrb[0].mxu0 %v728
    %v730 = vpop.f32.mrb[0].mxu0
    %v731 = vadd.f32 %v564, %v730
    %v732 = vpop.f32.mrb[0].mxu0
    %733 = vmatprep.mubr.f32.mxu0 0.0
    %v734 = vand.u32 %v74, 4294901760
    %v735 = vsub.f32 %v74, %v734
    %v736 = vand.u32 %v735, 4294901760
    %737 = vmatmul.mubr.f32.gmra.mrb[0].mxu0 %v736
    %v738 = vpop.f32.mrb[0].mxu0
    %v739 = vadd.f32 %v571, %v738
    %v740 = vpop.f32.mrb[0].mxu0
    %741 = vmatprep.mubr.f32.mxu0 0.0
    %v742 = vand.u32 %v77, 4294901760
    %v743 = vsub.f32 %v77, %v742
    %v744 = vand.u32 %v743, 4294901760
    %745 = vmatmul.mubr.f32.gmra.mrb[0].mxu0 %v744
    %v746 = vpop.f32.mrb[0].mxu0
    %v747 = vadd.f32 %v578, %v746
    %v748 = vpop.f32.mrb[0].mxu0
    %749 = vmatprep.mubr.f32.mxu0 0.0
    %v750 = vand.u32 %v80, 4294901760
    %v751 = vsub.f32 %v80, %v750
    %v752 = vand.u32 %v751, 4294901760
    %753 = vmatmul.mubr.f32.gmra.mrb[0].mxu0 %v752
    %v754 = vpop.f32.mrb[0].mxu0
    %v755 = vadd.f32 %v585, %v754
    %v756 = vpop.f32.mrb[0].mxu0
    %757 = vmatprep.mubr.f32.mxu0 0.0
    %v758 = vand.u32 %v83, 4294901760
    %v759 = vsub.f32 %v83, %v758
    %v760 = vand.u32 %v759, 4294901760
    %761 = vmatmul.mubr.f32.gmra.mrb[0].mxu0 %v760
    %v762 = vpop.f32.mrb[0].mxu0
    %v763 = vadd.f32 %v592, %v762
    %v764 = vpop.f32.mrb[0].mxu0
    %765 = vdwg.mxu0
    %766 = vmatprep.subr.mxu0 0.0
    %v767 = vand.u32 %v43, 4294901760
    %v768 = vsub.f32 %v43, %v767
    %v769 = vand.u32 %v768, 4294901760
    %770 = vmatpush1.msra.mxu0 %v769
    %771 = vmatprep.subr.mxu0 0.0
    %v772 = vand.u32 %v44, 4294901760
    %v773 = vsub.f32 %v44, %v772
    %v774 = vand.u32 %v773, 4294901760
    %775 = vmatpush1.msra.mxu0 %v774
    %776 = vmatprep.subr.mxu0 0.0
    %777 = vmatpush1.msra.mxu0 0.0
    %778 = vmatprep.subr.mxu0 0.0
    %779 = vmatpush1.msra.mxu0 0.0
    %780 = vmatprep.subr.mxu0 0.0
    %781 = vmatpush1.msra.mxu0 0.0
    %782 = vmatprep.subr.mxu0 0.0
    %783 = vmatpush1.msra.mxu0 0.0
    %784 = vmatprep.subr.mxu0 0.0
    %785 = vmatpush1.msra.mxu0 0.0
    %786 = vmatprep.subr.mxu0 0.0
    %787 = vmatpush1.msra.mxu0 0.0
    %788 = vmatprep.subr.mxu0 0.0
    %789 = vmatpush1.msra.mxu0 0.0
    %790 = vmatprep.subr.mxu0 0.0
    %791 = vmatpush1.msra.mxu0 0.0
    %792 = vmatprep.subr.mxu0 0.0
    %793 = vmatpush1.msra.mxu0 0.0
    %794 = vmatprep.subr.mxu0 0.0
    %795 = vmatpush1.msra.mxu0 0.0
    %796 = vmatprep.subr.mxu0 0.0
    %797 = vmatpush1.msra.mxu0 0.0
    %798 = vmatprep.subr.mxu0 0.0
    %799 = vmatpush1.msra.mxu0 0.0
    %800 = vmatprep.subr.mxu0 0.0
    %801 = vmatpush1.msra.mxu0 0.0
    %802 = vmatprep.subr.mxu0 0.0
    %803 = vmatpush1.msra.mxu0 0.0
    %804 = vmatprep.subr.mxu0 0.0
    %805 = vmatpush1.msra.mxu0 0.0
    %806 = vmatprep.subr.mxu0 0.0
    %807 = vmatpush1.msra.mxu0 0.0
    %808 = vmatprep.subr.mxu0 0.0
    %809 = vmatpush1.msra.mxu0 0.0
    %810 = vmatprep.subr.mxu0 0.0
    %811 = vmatpush1.msra.mxu0 0.0
    %812 = vmatprep.subr.mxu0 0.0
    %813 = vmatpush1.msra.mxu0 0.0
    %814 = vmatprep.subr.mxu0 0.0
    %815 = vmatpush1.msra.mxu0 0.0
    %816 = vmatprep.subr.mxu0 0.0
    %817 = vmatpush1.msra.mxu0 0.0
    %818 = vmatprep.subr.mxu0 0.0
    %819 = vmatpush1.msra.mxu0 0.0
    %820 = vmatprep.subr.mxu0 0.0
    %821 = vmatpush1.msra.mxu0 0.0
    %822 = vmatprep.subr.mxu0 0.0
    %823 = vmatpush1.msra.mxu0 0.0
    %824 = vmatprep.subr.mxu0 0.0
    %825 = vmatpush1.msra.mxu0 0.0
    %826 = vmatprep.subr.mxu0 0.0
    %827 = vmatpush1.msra.mxu0 0.0
    %828 = vmatprep.subr.mxu0 0.0
    %829 = vmatpush1.msra.mxu0 0.0
    %830 = vmatprep.subr.mxu0 0.0
    %831 = vmatpush1.msra.mxu0 0.0
    %832 = vmatprep.subr.mxu0 0.0
    %833 = vmatpush1.msra.mxu0 0.0
    %834 = vmatprep.subr.mxu0 0.0
    %835 = vmatpush1.msra.mxu0 0.0
    %836 = vmatprep.mubr.f32.mxu0 0.0
    %v837 = vand.u32 %v47, 4294901760
    %838 = vmatmul.mubr.f32.gmra.mrb[0].mxu0 %v837
    %v839 = vpop.f32.mrb[0].mxu0
    %v840 = vadd.f32 %v667, %v839
    %v841 = vpop.f32.mrb[0].mxu0
    %842 = vmatprep.mubr.f32.mxu0 0.0
    %v843 = vand.u32 %v50, 4294901760
    %844 = vmatmul.mubr.f32.gmra.mrb[0].mxu0 %v843
    %v845 = vpop.f32.mrb[0].mxu0
    %v846 = vadd.f32 %v675, %v845
    %v847 = vpop.f32.mrb[0].mxu0
    %848 = vmatprep.mubr.f32.mxu0 0.0
    %v849 = vand.u32 %v53, 4294901760
    %850 = vmatmul.mubr.f32.gmra.mrb[0].mxu0 %v849
    %v851 = vpop.f32.mrb[0].mxu0
    %v852 = vadd.f32 %v683, %v851
    %v853 = vpop.f32.mrb[0].mxu0
    %854 = vmatprep.mubr.f32.mxu0 0.0
    %v855 = vand.u32 %v56, 4294901760
    %856 = vmatmul.mubr.f32.gmra.mrb[0].mxu0 %v855
    %v857 = vpop.f32.mrb[0].mxu0
    %v858 = vadd.f32 %v691, %v857
    %v859 = vpop.f32.mrb[0].mxu0
    %860 = vmatprep.mubr.f32.mxu0 0.0
    %v861 = vand.u32 %v59, 4294901760
    %862 = vmatmul.mubr.f32.gmra.mrb[0].mxu0 %v861
    %v863 = vpop.f32.mrb[0].mxu0
    %v864 = vadd.f32 %v699, %v863
    %v865 = vpop.f32.mrb[0].mxu0
    %866 = vmatprep.mubr.f32.mxu0 0.0
    %v867 = vand.u32 %v62, 4294901760
    %868 = vmatmul.mubr.f32.gmra.mrb[0].mxu0 %v867
    %v869 = vpop.f32.mrb[0].mxu0
    %v870 = vadd.f32 %v707, %v869
    %v871 = vpop.f32.mrb[0].mxu0
    %872 = vmatprep.mubr.f32.mxu0 0.0
    %v873 = vand.u32 %v65, 4294901760
    %874 = vmatmul.mubr.f32.gmra.mrb[0].mxu0 %v873
    %v875 = vpop.f32.mrb[0].mxu0
    %v876 = vadd.f32 %v715, %v875
    %v877 = vpop.f32.mrb[0].mxu0
    %878 = vmatprep.mubr.f32.mxu0 0.0
    %v879 = vand.u32 %v68, 4294901760
    %880 = vmatmul.mubr.f32.gmra.mrb[0].mxu0 %v879
    %v881 = vpop.f32.mrb[0].mxu0
    %v882 = vadd.f32 %v723, %v881
    %v883 = vpop.f32.mrb[0].mxu0
    %884 = vmatprep.mubr.f32.mxu0 0.0
    %v885 = vand.u32 %v71, 4294901760
    %886 = vmatmul.mubr.f32.gmra.mrb[0].mxu0 %v885
    %v887 = vpop.f32.mrb[0].mxu0
    %v888 = vadd.f32 %v731, %v887
    %v889 = vpop.f32.mrb[0].mxu0
    %890 = vmatprep.mubr.f32.mxu0 0.0
    %v891 = vand.u32 %v74, 4294901760
    %892 = vmatmul.mubr.f32.gmra.mrb[0].mxu0 %v891
    %v893 = vpop.f32.mrb[0].mxu0
    %v894 = vadd.f32 %v739, %v893
    %v895 = vpop.f32.mrb[0].mxu0
    %896 = vmatprep.mubr.f32.mxu0 0.0
    %v897 = vand.u32 %v77, 4294901760
    %898 = vmatmul.mubr.f32.gmra.mrb[0].mxu0 %v897
    %v899 = vpop.f32.mrb[0].mxu0
    %v900 = vadd.f32 %v747, %v899
    %v901 = vpop.f32.mrb[0].mxu0
    %902 = vmatprep.mubr.f32.mxu0 0.0
    %v903 = vand.u32 %v80, 4294901760
    %904 = vmatmul.mubr.f32.gmra.mrb[0].mxu0 %v903
    %v905 = vpop.f32.mrb[0].mxu0
    %v906 = vadd.f32 %v755, %v905
    %v907 = vpop.f32.mrb[0].mxu0
    %908 = vmatprep.mubr.f32.mxu0 0.0
    %v909 = vand.u32 %v83, 4294901760
    %910 = vmatmul.mubr.f32.gmra.mrb[0].mxu0 %v909
    %v911 = vpop.f32.mrb[0].mxu0
    %v912 = vadd.f32 %v763, %v911
    %v913 = vpop.f32.mrb[0].mxu0
    %914 = vdwg.mxu0
    %915 = vmatprep.subr.mxu0 0.0
    %v916 = vand.u32 %v43, 4294901760
    %917 = vmatpush1.msra.mxu0 %v916
    %918 = vmatprep.subr.mxu0 0.0
    %v919 = vand.u32 %v44, 4294901760
    %920 = vmatpush1.msra.mxu0 %v919
    %921 = vmatprep.subr.mxu0 0.0
    %922 = vmatpush1.msra.mxu0 0.0
    %923 = vmatprep.subr.mxu0 0.0
    %924 = vmatpush1.msra.mxu0 0.0
    %925 = vmatprep.subr.mxu0 0.0
    %926 = vmatpush1.msra.mxu0 0.0
    %927 = vmatprep.subr.mxu0 0.0
    %928 = vmatpush1.msra.mxu0 0.0
    %929 = vmatprep.subr.mxu0 0.0
    %930 = vmatpush1.msra.mxu0 0.0
    %931 = vmatprep.subr.mxu0 0.0
    %932 = vmatpush1.msra.mxu0 0.0
    %933 = vmatprep.subr.mxu0 0.0
    %934 = vmatpush1.msra.mxu0 0.0
    %935 = vmatprep.subr.mxu0 0.0
    %936 = vmatpush1.msra.mxu0 0.0
    %937 = vmatprep.subr.mxu0 0.0
    %938 = vmatpush1.msra.mxu0 0.0
    %939 = vmatprep.subr.mxu0 0.0
    %940 = vmatpush1.msra.mxu0 0.0
    %941 = vmatprep.subr.mxu0 0.0
    %942 = vmatpush1.msra.mxu0 0.0
    %943 = vmatprep.subr.mxu0 0.0
    %944 = vmatpush1.msra.mxu0 0.0
    %945 = vmatprep.subr.mxu0 0.0
    %946 = vmatpush1.msra.mxu0 0.0
    %947 = vmatprep.subr.mxu0 0.0
    %948 = vmatpush1.msra.mxu0 0.0
    %949 = vmatprep.subr.mxu0 0.0
    %950 = vmatpush1.msra.mxu0 0.0
    %951 = vmatprep.subr.mxu0 0.0
    %952 = vmatpush1.msra.mxu0 0.0
    %953 = vmatprep.subr.mxu0 0.0
    %954 = vmatpush1.msra.mxu0 0.0
    %955 = vmatprep.subr.mxu0 0.0
    %956 = vmatpush1.msra.mxu0 0.0
    %957 = vmatprep.subr.mxu0 0.0
    %958 = vmatpush1.msra.mxu0 0.0
    %959 = vmatprep.subr.mxu0 0.0
    %960 = vmatpush1.msra.mxu0 0.0
    %961 = vmatprep.subr.mxu0 0.0
    %962 = vmatpush1.msra.mxu0 0.0
    %963 = vmatprep.subr.mxu0 0.0
    %964 = vmatpush1.msra.mxu0 0.0
    %965 = vmatprep.subr.mxu0 0.0
    %966 = vmatpush1.msra.mxu0 0.0
    %967 = vmatprep.subr.mxu0 0.0
    %968 = vmatpush1.msra.mxu0 0.0
    %969 = vmatprep.subr.mxu0 0.0
    %970 = vmatpush1.msra.mxu0 0.0
    %971 = vmatprep.subr.mxu0 0.0
    %972 = vmatpush1.msra.mxu0 0.0
    %973 = vmatprep.subr.mxu0 0.0
    %974 = vmatpush1.msra.mxu0 0.0
    %975 = vmatprep.subr.mxu0 0.0
    %976 = vmatpush1.msra.mxu0 0.0
    %977 = vmatprep.subr.mxu0 0.0
    %978 = vmatpush1.msra.mxu0 0.0
    %979 = vmatprep.subr.mxu0 0.0
    %980 = vmatpush1.msra.mxu0 0.0
    %981 = vmatprep.mubr.f32.mxu0 0.0
    %v982 = vand.u32 %v47, 4294901760
    %983 = vmatmul.mubr.f32.gmra.mrb[0].mxu0 %v982
    %v984 = vpop.f32.mrb[0].mxu0
    %v985 = vadd.f32 %v840, %v984
    %v986 = vpop.f32.mrb[0].mxu0
    %987 = vmatprep.mubr.f32.mxu0 0.0
    %v988 = vand.u32 %v50, 4294901760
    %989 = vmatmul.mubr.f32.gmra.mrb[0].mxu0 %v988
    %v990 = vpop.f32.mrb[0].mxu0
    %v991 = vadd.f32 %v846, %v990
    %v992 = vpop.f32.mrb[0].mxu0
    %993 = vmatprep.mubr.f32.mxu0 0.0
    %v994 = vand.u32 %v53, 4294901760
    %995 = vmatmul.mubr.f32.gmra.mrb[0].mxu0 %v994
    %v996 = vpop.f32.mrb[0].mxu0
    %v997 = vadd.f32 %v852, %v996
    %v998 = vpop.f32.mrb[0].mxu0
    %999 = vmatprep.mubr.f32.mxu0 0.0
    %v1000 = vand.u32 %v56, 4294901760
    %1001 = vmatmul.mubr.f32.gmra.mrb[0].mxu0 %v1000
    %v1002 = vpop.f32.mrb[0].mxu0
    %v1003 = vadd.f32 %v858, %v1002
    %v1004 = vpop.f32.mrb[0].mxu0
    %1005 = vmatprep.mubr.f32.mxu0 0.0
    %v1006 = vand.u32 %v59, 4294901760
    %1007 = vmatmul.mubr.f32.gmra.mrb[0].mxu0 %v1006
    %v1008 = vpop.f32.mrb[0].mxu0
    %v1009 = vadd.f32 %v864, %v1008
    %v1010 = vpop.f32.mrb[0].mxu0
    %1011 = vmatprep.mubr.f32.mxu0 0.0
    %v1012 = vand.u32 %v62, 4294901760
    %1013 = vmatmul.mubr.f32.gmra.mrb[0].mxu0 %v1012
    %v1014 = vpop.f32.mrb[0].mxu0
    %v1015 = vadd.f32 %v870, %v1014
    %v1016 = vpop.f32.mrb[0].mxu0
    %1017 = vmatprep.mubr.f32.mxu0 0.0
    %v1018 = vand.u32 %v65, 4294901760
    %1019 = vmatmul.mubr.f32.gmra.mrb[0].mxu0 %v1018
    %v1020 = vpop.f32.mrb[0].mxu0
    %v1021 = vadd.f32 %v876, %v1020
    %v1022 = vpop.f32.mrb[0].mxu0
    %1023 = vmatprep.mubr.f32.mxu0 0.0
    %v1024 = vand.u32 %v68, 4294901760
    %1025 = vmatmul.mubr.f32.gmra.mrb[0].mxu0 %v1024
    %v1026 = vpop.f32.mrb[0].mxu0
    %v1027 = vadd.f32 %v882, %v1026
    %v1028 = vpop.f32.mrb[0].mxu0
    %1029 = vmatprep.mubr.f32.mxu0 0.0
    %v1030 = vand.u32 %v71, 4294901760
    %1031 = vmatmul.mubr.f32.gmra.mrb[0].mxu0 %v1030
    %v1032 = vpop.f32.mrb[0].mxu0
    %v1033 = vadd.f32 %v888, %v1032
    %v1034 = vpop.f32.mrb[0].mxu0
    %1035 = vmatprep.mubr.f32.mxu0 0.0
    %v1036 = vand.u32 %v74, 4294901760
    %1037 = vmatmul.mubr.f32.gmra.mrb[0].mxu0 %v1036
    %v1038 = vpop.f32.mrb[0].mxu0
    %v1039 = vadd.f32 %v894, %v1038
    %v1040 = vpop.f32.mrb[0].mxu0
    %1041 = vmatprep.mubr.f32.mxu0 0.0
    %v1042 = vand.u32 %v77, 4294901760
    %1043 = vmatmul.mubr.f32.gmra.mrb[0].mxu0 %v1042
    %v1044 = vpop.f32.mrb[0].mxu0
    %v1045 = vadd.f32 %v900, %v1044
    %v1046 = vpop.f32.mrb[0].mxu0
    %1047 = vmatprep.mubr.f32.mxu0 0.0
    %v1048 = vand.u32 %v80, 4294901760
    %1049 = vmatmul.mubr.f32.gmra.mrb[0].mxu0 %v1048
    %v1050 = vpop.f32.mrb[0].mxu0
    %v1051 = vadd.f32 %v906, %v1050
    %v1052 = vpop.f32.mrb[0].mxu0
    %1053 = vmatprep.mubr.f32.mxu0 0.0
    %v1054 = vand.u32 %v83, 4294901760
    %1055 = vmatmul.mubr.f32.gmra.mrb[0].mxu0 %v1054
    %v1056 = vpop.f32.mrb[0].mxu0
    %v1057 = vadd.f32 %v912, %v1056
    %v1058 = vpop.f32.mrb[0].mxu0
    %1059 = vdwg.mxu0
    %v1060 = vsub.f32 %v17, %v985
    %v1061 = vsub.f32 %v18, %v991
    %v1062 = vsub.f32 %v19, %v997
    %v1063 = vsub.f32 %v20, %v1003
    %v1064 = vsub.f32 %v21, %v1009
    %v1065 = vsub.f32 %v22, %v1015
    %v1066 = vsub.f32 %v23, %v1021
    %v1067 = vsub.f32 %v24, %v1027
    %v1068 = vsub.f32 %v25, %v1033
    %v1069 = vsub.f32 %v26, %v1039
    %v1070 = vsub.f32 %v27, %v1045
    %v1071 = vsub.f32 %v28, %v1051
    %v1072 = vsub.f32 %v29, %v1057
    %1073 = vadd.xlane.f32.xlu0 %v1060
    %v1074 = vpop.xlane.xlu0 %1073
    %1075 = vadd.xlane.f32.xlu0 %v1061
    %v1076 = vpop.xlane.xlu0 %1075
    %1077 = vadd.xlane.f32.xlu0 %v1062
    %v1078 = vpop.xlane.xlu0 %1077
    %1079 = vadd.xlane.f32.xlu0 %v1063
    %v1080 = vpop.xlane.xlu0 %1079
    %1081 = vadd.xlane.f32.xlu0 %v1064
    %v1082 = vpop.xlane.xlu0 %1081
    %1083 = vadd.xlane.f32.xlu0 %v1065
    %v1084 = vpop.xlane.xlu0 %1083
    %1085 = vadd.xlane.f32.xlu0 %v1066
    %v1086 = vpop.xlane.xlu0 %1085
    %1087 = vadd.xlane.f32.xlu0 %v1067
    %v1088 = vpop.xlane.xlu0 %1087
    %1089 = vadd.xlane.f32.xlu0 %v1068
    %v1090 = vpop.xlane.xlu0 %1089
    %1091 = vadd.xlane.f32.xlu0 %v1069
    %v1092 = vpop.xlane.xlu0 %1091
    %1093 = vadd.xlane.f32.xlu0 %v1070
    %v1094 = vpop.xlane.xlu0 %1093
    %1095 = vadd.xlane.f32.xlu0 %v1071
    %v1096 = vpop.xlane.xlu0 %1095
    %1097 = vadd.xlane.f32.xlu0 %v1072
    %v1098 = vpop.xlane.xlu0 %1097
    %v1099 = vmul.f32 %v1074, 0.0078125
    %v1100 = vmul.f32 %v1076, 0.0078125
    %v1101 = vmul.f32 %v1078, 0.0078125
    %v1102 = vmul.f32 %v1080, 0.0078125
    %v1103 = vmul.f32 %v1082, 0.0078125
    %v1104 = vmul.f32 %v1084, 0.0078125
    %v1105 = vmul.f32 %v1086, 0.0078125
    %v1106 = vmul.f32 %v1088, 0.0078125
    %v1107 = vmul.f32 %v1090, 0.0078125
    %v1108 = vmul.f32 %v1092, 0.0078125
    %v1109 = vmul.f32 %v1094, 0.0078125
    %v1110 = vmul.f32 %v1096, 0.0078125
    %v1111 = vmul.f32 %v1098, 0.0078125
    %v1112 = vsub.f32 %v1060, %v1099
    %v1113 = vsub.f32 %v1061, %v1100
    %v1114 = vsub.f32 %v1062, %v1101
    %v1115 = vsub.f32 %v1063, %v1102
    %v1116 = vsub.f32 %v1064, %v1103
    %v1117 = vsub.f32 %v1065, %v1104
    %v1118 = vsub.f32 %v1066, %v1105
    %v1119 = vsub.f32 %v1067, %v1106
    %v1120 = vsub.f32 %v1068, %v1107
    %v1121 = vsub.f32 %v1069, %v1108
    %v1122 = vsub.f32 %v1070, %v1109
    %v1123 = vsub.f32 %v1071, %v1110
    %v1124 = vsub.f32 %v1072, %v1111
    %v1125 = vmul.f32 %v1112, %v1112
    %v1126 = vmul.f32 %v1113, %v1113
    %v1127 = vmul.f32 %v1114, %v1114
    %v1128 = vmul.f32 %v1115, %v1115
    %v1129 = vmul.f32 %v1116, %v1116
    %v1130 = vmul.f32 %v1117, %v1117
    %v1131 = vmul.f32 %v1118, %v1118
    %v1132 = vmul.f32 %v1119, %v1119
    %v1133 = vmul.f32 %v1120, %v1120
    %v1134 = vmul.f32 %v1121, %v1121
    %v1135 = vmul.f32 %v1122, %v1122
    %v1136 = vmul.f32 %v1123, %v1123
    %v1137 = vmul.f32 %v1124, %v1124
    %1138 = vadd.xlane.f32.xlu0 %v1125
    %v1139 = vpop.xlane.xlu0 %1138
    %1140 = vadd.xlane.f32.xlu0 %v1126
    %v1141 = vpop.xlane.xlu0 %1140
    %1142 = vadd.xlane.f32.xlu0 %v1127
    %v1143 = vpop.xlane.xlu0 %1142
    %1144 = vadd.xlane.f32.xlu0 %v1128
    %v1145 = vpop.xlane.xlu0 %1144
    %1146 = vadd.xlane.f32.xlu0 %v1129
    %v1147 = vpop.xlane.xlu0 %1146
    %1148 = vadd.xlane.f32.xlu0 %v1130
    %v1149 = vpop.xlane.xlu0 %1148
    %1150 = vadd.xlane.f32.xlu0 %v1131
    %v1151 = vpop.xlane.xlu0 %1150
    %1152 = vadd.xlane.f32.xlu0 %v1132
    %v1153 = vpop.xlane.xlu0 %1152
    %1154 = vadd.xlane.f32.xlu0 %v1133
    %v1155 = vpop.xlane.xlu0 %1154
    %1156 = vadd.xlane.f32.xlu0 %v1134
    %v1157 = vpop.xlane.xlu0 %1156
    %1158 = vadd.xlane.f32.xlu0 %v1135
    %v1159 = vpop.xlane.xlu0 %1158
    %1160 = vadd.xlane.f32.xlu0 %v1136
    %v1161 = vpop.xlane.xlu0 %1160
    %1162 = vadd.xlane.f32.xlu0 %v1137
    %v1163 = vpop.xlane.xlu0 %1162
    %v1164 = vmul.f32 %v1139, 0.0078125
    %v1165 = vmul.f32 %v1141, 0.0078125
    %v1166 = vmul.f32 %v1143, 0.0078125
    %v1167 = vmul.f32 %v1145, 0.0078125
    %v1168 = vmul.f32 %v1147, 0.0078125
    %v1169 = vmul.f32 %v1149, 0.0078125
    %v1170 = vmul.f32 %v1151, 0.0078125
    %v1171 = vmul.f32 %v1153, 0.0078125
    %v1172 = vmul.f32 %v1155, 0.0078125
    %v1173 = vmul.f32 %v1157, 0.0078125
    %v1174 = vmul.f32 %v1159, 0.0078125
    %v1175 = vmul.f32 %v1161, 0.0078125
    %v1176 = vmul.f32 %v1163, 0.0078125
    %v1177 = vadd.f32 %v1164, 1e-05
    %v1178 = vadd.f32 %v1165, 1e-05
    %v1179 = vadd.f32 %v1166, 1e-05
    %v1180 = vadd.f32 %v1167, 1e-05
    %v1181 = vadd.f32 %v1168, 1e-05
    %v1182 = vadd.f32 %v1169, 1e-05
    %v1183 = vadd.f32 %v1170, 1e-05
    %v1184 = vadd.f32 %v1171, 1e-05
    %v1185 = vadd.f32 %v1172, 1e-05
    %v1186 = vadd.f32 %v1173, 1e-05
    %v1187 = vadd.f32 %v1174, 1e-05
    %v1188 = vadd.f32 %v1175, 1e-05
    %v1189 = vadd.f32 %v1176, 1e-05
    %v1190 = vrsqrt.pop %v1177
    %v1191 = vrsqrt.pop %v1178
    %v1192 = vrsqrt.pop %v1179
    %v1193 = vrsqrt.pop %v1180
    %v1194 = vrsqrt.pop %v1181
    %v1195 = vrsqrt.pop %v1182
    %v1196 = vrsqrt.pop %v1183
    %v1197 = vrsqrt.pop %v1184
    %v1198 = vrsqrt.pop %v1185
    %v1199 = vrsqrt.pop %v1186
    %v1200 = vrsqrt.pop %v1187
    %v1201 = vrsqrt.pop %v1188
    %v1202 = vrsqrt.pop %v1189
    %v1203 = vmul.f32 %v1112, %v1190
    %v1204 = vmul.f32 %v1113, %v1191
    %v1205 = vmul.f32 %v1114, %v1192
    %v1206 = vmul.f32 %v1115, %v1193
    %v1207 = vmul.f32 %v1116, %v1194
    %v1208 = vmul.f32 %v1117, %v1195
    %v1209 = vmul.f32 %v1118, %v1196
    %v1210 = vmul.f32 %v1119, %v1197
    %v1211 = vmul.f32 %v1120, %v1198
    %v1212 = vmul.f32 %v1121, %v1199
    %v1213 = vmul.f32 %v1122, %v1200
    %v1214 = vmul.f32 %v1123, %v1201
    %v1215 = vmul.f32 %v1124, %v1202
    %1216 = vst [vmem:[#allocation2] sm:$0xff] %v1203
    %1217 = vst [vmem:[#allocation2 + $0x8] sm:$0xff] %v1204
    %1218 = vst [vmem:[#allocation2 + $0x10] sm:$0xff] %v1205
    %1219 = vst [vmem:[#allocation2 + $0x18] sm:$0xff] %v1206
    %1220 = vst [vmem:[#allocation2 + $0x20] sm:$0xff] %v1207
    %1221 = vst [vmem:[#allocation2 + $0x28] sm:$0xff] %v1208
    %1222 = vst [vmem:[#allocation2 + $0x30] sm:$0xff] %v1209
    %1223 = vst [vmem:[#allocation2 + $0x38] sm:$0xff] %v1210
    %1224 = vst [vmem:[#allocation2 + $0x40] sm:$0xff] %v1211
    %1225 = vst [vmem:[#allocation2 + $0x48] sm:$0xff] %v1212
    %1226 = vst [vmem:[#allocation2 + $0x50] sm:$0xff] %v1213
    %1227 = vst [vmem:[#allocation2 + $0x58] sm:$0xff] %v1214
    %1228 = vst [vmem:[#allocation2 + $0x60] sm:$0xff] %v1215
    %v1229 = vlaneseq
    %v1230 = vshrl.u32 %v1229, 7
    %v1231 = vadd.s32 %v1230, 8
    %v1232 = vadd.s32 %v1230, 16
    %v1233 = vadd.s32 %v1230, 24
    %v1234 = vadd.s32 %v1230, 32
    %v1235 = vadd.s32 %v1230, 40
    %v1236 = vadd.s32 %v1230, 48
    %v1237 = vadd.s32 %v1230, 56
    %v1238 = vadd.s32 %v1230, 64
    %v1239 = vadd.s32 %v1230, 72
    %v1240 = vadd.s32 %v1230, 80
    %v1241 = vadd.s32 %v1230, 88
    %v1242 = vadd.s32 %v1230, 96
    %s1243 = smul.u32 0, 104
    %v1244 = vstv %s1243
    %v1245 = vadd.s32 %v1244, %v1230
    %v1246 = vadd.s32 %v1244, %v1231
    %v1247 = vadd.s32 %v1244, %v1232
    %v1248 = vadd.s32 %v1244, %v1233
    %v1249 = vadd.s32 %v1244, %v1234
    %v1250 = vadd.s32 %v1244, %v1235
    %v1251 = vadd.s32 %v1244, %v1236
    %v1252 = vadd.s32 %v1244, %v1237
    %v1253 = vadd.s32 %v1244, %v1238
    %v1254 = vadd.s32 %v1244, %v1239
    %v1255 = vadd.s32 %v1244, %v1240
    %v1256 = vadd.s32 %v1244, %v1241
    %v1257 = vadd.s32 %v1244, %v1242
    %vm1258 = vcmp.lt.s32.totalorder %v1245, 100
    %vm1259 = vcmp.lt.s32.totalorder %v1246, 100
    %vm1260 = vcmp.lt.s32.totalorder %v1247, 100
    %vm1261 = vcmp.lt.s32.totalorder %v1248, 100
    %vm1262 = vcmp.lt.s32.totalorder %v1249, 100
    %vm1263 = vcmp.lt.s32.totalorder %v1250, 100
    %vm1264 = vcmp.lt.s32.totalorder %v1251, 100
    %vm1265 = vcmp.lt.s32.totalorder %v1252, 100
    %vm1266 = vcmp.lt.s32.totalorder %v1253, 100
    %vm1267 = vcmp.lt.s32.totalorder %v1254, 100
    %vm1268 = vcmp.lt.s32.totalorder %v1255, 100
    %vm1269 = vcmp.lt.s32.totalorder %v1256, 100
    %vm1270 = vcmp.lt.s32.totalorder %v1257, 100
    %vm1271 = vcmp.ne.f32.partialorder %v1074, %v1074
    %vm1272 = vcmp.ne.f32.partialorder %v1076, %v1076
    %vm1273 = vcmp.ne.f32.partialorder %v1078, %v1078
    %vm1274 = vcmp.ne.f32.partialorder %v1080, %v1080
    %vm1275 = vcmp.ne.f32.partialorder %v1082, %v1082
    %vm1276 = vcmp.ne.f32.partialorder %v1084, %v1084
    %vm1277 = vcmp.ne.f32.partialorder %v1086, %v1086
    %vm1278 = vcmp.ne.f32.partialorder %v1088, %v1088
    %vm1279 = vcmp.ne.f32.partialorder %v1090, %v1090
    %vm1280 = vcmp.ne.f32.partialorder %v1092, %v1092
    %vm1281 = vcmp.ne.f32.partialorder %v1094, %v1094
    %vm1282 = vcmp.ne.f32.partialorder %v1096, %v1096
    %vm1283 = vcmp.ne.f32.partialorder %v1098, %v1098
    %v1284 = vsel %vm1271, 1, 0
    %v1285 = vsel %vm1272, 1, 0
    %v1286 = vsel %vm1273, 1, 0
    %v1287 = vsel %vm1274, 1, 0
    %v1288 = vsel %vm1275, 1, 0
    %v1289 = vsel %vm1276, 1, 0
    %v1290 = vsel %vm1277, 1, 0
    %v1291 = vsel %vm1278, 1, 0
    %v1292 = vsel %vm1279, 1, 0
    %v1293 = vsel %vm1280, 1, 0
    %v1294 = vsel %vm1281, 1, 0
    %v1295 = vsel %vm1282, 1, 0
    %v1296 = vsel %vm1283, 1, 0
    %vm1297 = vcmp.eq.s32.totalorder %v1284, 1
    %vm1298 = vcmp.eq.s32.totalorder %v1285, 1
    %vm1299 = vcmp.eq.s32.totalorder %v1286, 1
    %vm1300 = vcmp.eq.s32.totalorder %v1287, 1
    %vm1301 = vcmp.eq.s32.totalorder %v1288, 1
    %vm1302 = vcmp.eq.s32.totalorder %v1289, 1
    %vm1303 = vcmp.eq.s32.totalorder %v1290, 1
    %vm1304 = vcmp.eq.s32.totalorder %v1291, 1
    %vm1305 = vcmp.eq.s32.totalorder %v1292, 1
    %vm1306 = vcmp.eq.s32.totalorder %v1293, 1
    %vm1307 = vcmp.eq.s32.totalorder %v1294, 1
    %vm1308 = vcmp.eq.s32.totalorder %v1295, 1
    %vm1309 = vcmp.eq.s32.totalorder %v1296, 1
    %vm1310 = vmand %vm1258, %vm1297
    %vm1311 = vmand %vm1259, %vm1298
    %vm1312 = vmand %vm1260, %vm1299
    %vm1313 = vmand %vm1261, %vm1300
    %vm1314 = vmand %vm1262, %vm1301
    %vm1315 = vmand %vm1263, %vm1302
    %vm1316 = vmand %vm1264, %vm1303
    %vm1317 = vmand %vm1265, %vm1304
    %vm1318 = vmand %vm1266, %vm1305
    %vm1319 = vmand %vm1267, %vm1306
    %vm1320 = vmand %vm1268, %vm1307
    %vm1321 = vmand %vm1269, %vm1308
    %vm1322 = vmand %vm1270, %vm1309
    %v1323 = vsel %vm1310, 1, 0
    %v1324 = vsel %vm1311, 1, 0
    %v1325 = vsel %vm1312, 1, 0
    %v1326 = vsel %vm1313, 1, 0
    %v1327 = vsel %vm1314, 1, 0
    %v1328 = vsel %vm1315, 1, 0
    %v1329 = vsel %vm1316, 1, 0
    %v1330 = vsel %vm1317, 1, 0
    %v1331 = vsel %vm1318, 1, 0
    %v1332 = vsel %vm1319, 1, 0
    %v1333 = vsel %vm1320, 1, 0
    %v1334 = vsel %vm1321, 1, 0
    %v1335 = vsel %vm1322, 1, 0
    %v1336 = vcvt.s32.f32 %v1323
    %v1337 = vcvt.s32.f32 %v1324
    %v1338 = vcvt.s32.f32 %v1325
    %v1339 = vcvt.s32.f32 %v1326
    %v1340 = vcvt.s32.f32 %v1327
    %v1341 = vcvt.s32.f32 %v1328
    %v1342 = vcvt.s32.f32 %v1329
    %v1343 = vcvt.s32.f32 %v1330
    %v1344 = vcvt.s32.f32 %v1331
    %v1345 = vcvt.s32.f32 %v1332
    %v1346 = vcvt.s32.f32 %v1333
    %v1347 = vcvt.s32.f32 %v1334
    %v1348 = vcvt.s32.f32 %v1335
    %v1349 = vadd.f32 %v1336, %v1337
    %v1350 = vadd.f32 %v1349, %v1338
    %v1351 = vadd.f32 %v1350, %v1339
    %v1352 = vadd.f32 %v1351, %v1340
    %v1353 = vadd.f32 %v1352, %v1341
    %v1354 = vadd.f32 %v1353, %v1342
    %v1355 = vadd.f32 %v1354, %v1343
    %v1356 = vadd.f32 %v1355, %v1344
    %v1357 = vadd.f32 %v1356, %v1345
    %v1358 = vadd.f32 %v1357, %v1346
    %v1359 = vadd.f32 %v1358, %v1347
    %v1360 = vadd.f32 %v1359, %v1348
    %v1361 = vrot.slane %v1360, 4
    %v1362 = vadd.f32 %v1360, %v1361
    %v1363 = vrot.slane %v1362, 2
    %v1364 = vadd.f32 %v1362, %v1363
    %v1365 = vrot.slane %v1364, 1
    %v1366 = vadd.f32 %v1364, %v1365
    %1367 = vst [vmem:[%s4] sm:$0xff] %v1366
    // Predicated region
    $region14: #{regbn_forward.1} parent=1 // pred_check
      _
    $region15: #{regbn_forward.1} parent=1 // pred_check_branch
      %1369 = sbr.rel (0) target = $region17
    $region16: #{regbn_forward.1} parent=1 // pred_region
      %s1371 = ssub.s32 1664, 1664
      %1372 = vsyncadd [#allocation3], %s1371
      %s1373 = sshll.u32 [#allocation2], 4
      %s1374 = int_to_ptr.vmem [resolvable:$true] %s1373
      %1379 = dma.vmem_to_hbm [thread:$0]  %s1374, 1664, %s3, [#allocation3], 128, 128, 8
    $region17: #{regbn_forward.1} parent=1 // pred_fallthru
      _
    // Predicated region
    $region18: #{regbn_forward.1} parent=1 // pred_check
      _
    $region19: #{regbn_forward.1} parent=1 // pred_check_branch
      %1381 = sbr.rel (0) target = $region21
    $region20: #{regbn_forward.1} parent=1 // pred_region
      _
    $region21: #{regbn_forward.1} parent=1 // pred_fallthru
      _
    // Predicated region
    $region22: #{regbn_forward.1} parent=1 // pred_check
      _
    $region23: #{regbn_forward.1} parent=1 // pred_check_branch
      %1383 = sbr.rel (0) target = $region25
    $region24: #{regbn_forward.1} parent=1 // pred_region
      %1384 = dma.done [#allocation3], 1664
    $region25: #{regbn_forward.1} parent=1 // pred_fallthru
      _
    // Predicated region
    $region26: #{regbn_forward.1} parent=1 // pred_check
      _
    $region27: #{regbn_forward.1} parent=1 // pred_check_branch
      %1386 = sbr.rel (0) target = $region29
    $region28: #{regbn_forward.1} parent=1 // pred_region
      _
    $region29: #{regbn_forward.1} parent=1 // pred_fallthru
      _
    %1387 = vsyncpa [#allocation3], 1

</llo_original>
